<compile_context>
chip_gen: v7x
topology: tpu7x:2x2x1
jax: 0.10.0
libtpu: 0.0.40
codegen_flags: <defaults>
</compile_context>

<pallas_src>
import numpy as np
import jax
import jax.numpy as jnp
from jax.experimental import pallas as pl
from jax.experimental.pallas import tpu as pltpu

SAMPLE_RATE = 16000
N_FFT = 512
WIN_LENGTH = 400
HOP = 160
N_MELS = 40
N_FREQ = 256          # onesided rFFT bins minus the (negligible-weight) Nyquist bin
N_MELS_PAD = 128      # lane-dense mel width; sliced back to N_MELS in the wrapper
CHUNK = HOP           # 160-sample waveform chunks; frame f = chunks[f .. f+3]
CHUNKS_PER_FRAME = 4  # ceil(N_FFT / CHUNK): frame 512 = 3*160 + 32


def _round_up(x, m):
    return ((x + m - 1) // m) * m


# ---------------------------------------------------------------------------
# Deterministic "parameter" construction (windowed DFT matrices, mel filterbank)
# ---------------------------------------------------------------------------
def _hamming_window_padded():
    # torch.hamming_window(400) (periodic), centered-padded to n_fft as in torch.stft
    n = np.arange(WIN_LENGTH, dtype=np.float64)
    w = 0.54 - 0.46 * np.cos(2.0 * np.pi * n / WIN_LENGTH)
    pad_l = (N_FFT - WIN_LENGTH) // 2
    return np.pad(w, (pad_l, N_FFT - WIN_LENGTH - pad_l))          # (512,)


def _windowed_dft_chunked():
    """(4, 160, 512) windowed real-DFT split by 160-sample chunk.

    Columns 0..255 are the real part, 256..511 the (negated-sin) imaginary
    part; the Hamming window is folded in.  Row m of slab j corresponds to
    frame sample n = 160*j + m (zero for n >= 512, i.e. slab 3 rows 32..159).
    """
    win = _hamming_window_padded()[:, None]
    n = np.arange(N_FFT, dtype=np.float64)[:, None]
    k = np.arange(N_FREQ, dtype=np.float64)[None, :]
    ang = 2.0 * np.pi * n * k / N_FFT
    d = np.concatenate([win * np.cos(ang), -win * np.sin(ang)], axis=1)   # (512, 512)
    d_full = np.zeros((CHUNKS_PER_FRAME * CHUNK, 2 * N_FREQ), np.float64)  # (640, 512)
    d_full[:N_FFT] = d
    return d_full.reshape(CHUNKS_PER_FRAME, CHUNK, 2 * N_FREQ).astype(np.float32)


def _mel_filterbank_padded():
    # torchaudio.functional.melscale_fbanks(257, 0, 8000, 40, 16000, norm=None, 'htk').
    # The Nyquist row is dropped: it is zero in exact arithmetic and <= ~1e-6 in
    # float32 (mel<->hz round-trip), i.e. far below the bf16 DFT precision and
    # the +1e-6 epsilon added before the log.  Columns are zero-padded to 128.
    def hz_to_mel(f):
        return 2595.0 * np.log10(1.0 + f / 700.0)

    def mel_to_hz(m):
        return 700.0 * (10.0 ** (m / 2595.0) - 1.0)

    n_freqs_full = N_FFT // 2 + 1                                   # 257
    all_freqs = np.linspace(0.0, SAMPLE_RATE / 2.0, n_freqs_full)
    m_pts = np.linspace(hz_to_mel(0.0), hz_to_mel(SAMPLE_RATE / 2.0), N_MELS + 2)
    f_pts = mel_to_hz(m_pts)
    f_diff = f_pts[1:] - f_pts[:-1]
    slopes = f_pts[None, :] - all_freqs[:, None]
    down = -slopes[:, :-2] / f_diff[:-1]
    up = slopes[:, 2:] / f_diff[1:]
    fb = np.maximum(0.0, np.minimum(down, up))                      # (257, 40)
    fb_pad = np.zeros((N_FREQ, N_MELS_PAD), np.float32)
    fb_pad[:, :N_MELS] = fb[:N_FREQ, :]
    return fb_pad                                                   # (256, 128) f32


# ---------------------------------------------------------------------------
# Block-size heuristics (generation-aware)
# ---------------------------------------------------------------------------
def _tensorcores_per_chip():
    try:
        kind = jax.devices()[0].device_kind.lower()
    except Exception:
        return 1
    if "lite" in kind or "v5e" in kind or "v6" in kind:
        return 1                       # single-TensorCore generations
    if any(t in kind for t in ("v4", "v5p", "v7")):
        return 2                       # megacore / 2 TCs per chip
    return 1


def _pick_batch_block(batch, f_pad, n_cores, max_rows=2048):
    """Batch elements folded into one grid step.

    Single-TC chips: one big block (fewest grid steps, largest matmul M,
    constants loaded once).  2-TC chips: largest block that still leaves
    >= n_cores parallel grid steps.  Rows are bounded so VMEM stays small.
    """
    divs = [d for d in range(1, batch + 1)
            if batch % d == 0 and d * f_pad <= max_rows and d <= 64]
    if not divs:
        return 1
    if n_cores >= 2:
        multi = [d for d in divs if batch // d >= n_cores]
        if multi:
            return max(multi)
    return max(divs)


# ---------------------------------------------------------------------------
# Pallas kernel: one batch *block* per grid step
# ---------------------------------------------------------------------------
def _make_kernel(bblk, f_pad, f_real):
    rows = bblk * f_pad

    def kernel(chunks_ref, dft_ref, mel_ref, out_ref):
        # chunks_ref: (bblk, n_chunks, 160) bf16 — non-overlapping waveform chunks
        # dft_ref   : (4, 160, 512) bf16     — windowed DFT (re|im), chunk-sliced
        # mel_ref   : (256, 128) f32         — mel filterbank (grid-invariant;
        #                                      constant index_map, not re-DMA'd)
        # out_ref   : (bblk, 128, f_pad) f32 — (mel, frame), already transposed
        #
        # Windowed real DFT via 4 shifted MXU matmuls (in-kernel framing):
        #   Spec[f] = sum_j chunks[f + j] @ dft[j]        (f32 accumulation)
        spec = None
        for j in range(CHUNKS_PER_FRAME):
            cj = chunks_ref[:, pl.ds(j, f_pad), :].reshape(rows, CHUNK)
            pj = jnp.dot(cj, dft_ref[j], preferred_element_type=jnp.float32)
            spec = pj if spec is None else spec + pj                # (rows, 512) f32

        re = spec[:, :N_FREQ]
        im = spec[:, N_FREQ:]
        power = re * re + im * im                                   # (rows, 256) f32

        # Mel filterbank matmul kept in f32 (cheap; recovers bf16 accuracy loss),
        # then +eps, log (EUP).
        mel = jnp.dot(power, mel_ref[...], preferred_element_type=jnp.float32)
        logmel = jnp.log(mel + 1e-6).reshape(bblk, f_pad, N_MELS_PAD)

        # InstanceNorm1d (affine=False, eps=1e-5) over the real frames only.
        # Two-pass mean/var to avoid E[x^2]-E[x]^2 cancellation.
        inv_f = 1.0 / f_real
        if f_real != f_pad:
            fid = jax.lax.broadcasted_iota(jnp.int32, (bblk, f_pad, N_MELS_PAD), 1)
            mask = (fid < f_real).astype(jnp.float32)
            masked = logmel * mask
        else:
            mask = None
            masked = logmel
        mean = jnp.sum(masked, axis=1, keepdims=True) * inv_f
        cen = logmel - mean
        cen_m = cen * mask if mask is not None else cen
        var = jnp.sum(cen_m * cen_m, axis=1, keepdims=True) * inv_f
        normed = cen * jax.lax.rsqrt(var + 1e-5)                    # (bblk, f_pad, 128)

        # Store transposed (mel, frame): the wrapper then only slices (no
        # post-kernel transpose HBM pass).  2-D transposes use the XLU slot.
        for b in range(bblk):
            out_ref[b, :, :] = normed[b].T

    return kernel


def resnetse_forward(x):
    """x: (B, T) float32 waveform -> (B, 1, N_MELS, n_frames) float32."""
    B, T = x.shape
    if T < N_FFT // 2 + 1:
        raise ValueError(f"waveform too short for reflect padding: T={T} < {N_FFT // 2 + 1}")

    f_real = 1 + T // HOP                              # torch.stft(center=True) frame count
    f_pad = _round_up(f_real, 8)                       # keep sublane tiling / flattening clean
    n_chunks = _round_up(
        max(f_pad + CHUNKS_PER_FRAME - 1, -(-(T + N_FFT) // CHUNK)), 8)

    # One pass over the audio: reflect pad (center=True), zero-pad the tail to a
    # whole number of chunks, cast to bf16, reshape into non-overlapping chunks.
    xp = jnp.pad(x.astype(jnp.float32), ((0, 0), (N_FFT // 2, N_FFT // 2)), mode="reflect")
    xp = jnp.pad(xp, ((0, 0), (0, n_chunks * CHUNK - xp.shape[1])))
    chunks = xp.astype(jnp.bfloat16).reshape(B, n_chunks, CHUNK)    # (B, n_chunks, 160)

    dft = jnp.asarray(_windowed_dft_chunked(), dtype=jnp.bfloat16)  # (4, 160, 512)
    melfb = jnp.asarray(_mel_filterbank_padded(), dtype=jnp.float32)  # (256, 128)

    bblk = _pick_batch_block(B, f_pad, _tensorcores_per_chip())
    grid = (B // bblk,)

    # TODO(synk): for very long utterances (f_pad*bblk >> 2048) add a frame-tile
    # grid axis with two-pass norm statistics so the per-step VMEM stays bounded.
    out = pl.pallas_call(
        _make_kernel(bblk, f_pad, f_real),
        out_shape=jax.ShapeDtypeStruct((B, N_MELS_PAD, f_pad), jnp.float32),
        grid_spec=pltpu.PrefetchScalarGridSpec(
            num_scalar_prefetch=0,
            grid=grid,
            in_specs=[
                pl.BlockSpec((bblk, n_chunks, CHUNK), lambda b: (b, 0, 0)),       # chunks
                pl.BlockSpec((CHUNKS_PER_FRAME, CHUNK, 2 * N_FREQ),
                             lambda b: (0, 0, 0)),                                # windowed DFT
                pl.BlockSpec((N_FREQ, N_MELS_PAD), lambda b: (0, 0)),             # mel filterbank
            ],
            out_specs=pl.BlockSpec((bblk, N_MELS_PAD, f_pad), lambda b: (b, 0, 0)),
        ),
        compiler_params=pltpu.CompilerParams(
            dimension_semantics=("parallel",),
            vmem_limit_bytes=48 * 1024 * 1024,
        ),
    )(chunks, dft, melfb)

    # (B, 128, F_pad) -> slice real mels / real frames, unsqueeze channel dim.
    # No transpose needed: the kernel already stores (mel, frame).
    return out[:, None, :N_MELS, :f_real]


if __name__ == "__main__":
    key = jax.random.PRNGKey(0)
    B, T = 2, 2400  # 0.15 s of 16 kHz audio -> 1 + 2400 // 160 = 16 frames
    x = jax.random.normal(key, (B, T), dtype=jnp.float32)

    y = jax.block_until_ready(resnetse_forward(x))

    n_frames = 1 + T // HOP
    assert y.shape == (B, 1, N_MELS, n_frames), y.shape
    assert bool(jnp.isfinite(y).all())
    # per-(batch, mel) normalization over time: mean ~ 0, std ~ 1
    mean_t = jnp.mean(y, axis=-1)
    std_t = jnp.std(y, axis=-1)
    assert bool(jnp.max(jnp.abs(mean_t)) < 1e-3)
    assert bool(jnp.max(jnp.abs(std_t - 1.0)) < 2e-2)
    print("KERNEL_OK")
</pallas_src>

<mosaic_0001>
module attributes {stable_mosaic.version = 11 : i64} {
  func.func @kernel(%arg0: i32, %arg1: memref<2x24x160xbf16, #tpu.memory_space<vmem>>, %arg2: memref<4x160x512xbf16, #tpu.memory_space<vmem>>, %arg3: memref<256x128xf32, #tpu.memory_space<vmem>>, %arg4: memref<2x128x16xf32, #tpu.memory_space<vmem>>) attributes {dimension_semantics = [#tpu.dimension_semantics<parallel>], iteration_bounds = array<i64: 1>, scalar_prefetch = 0 : i64, scratch_operands = 0 : i64, tpu.core_type = #tpu.core_type<tc>, window_params = [{transform_indices = @transform_0, window_bounds = array<i64: 2, 24, 160>}, {pipeline_mode = #tpu.pipeline_mode<synchronous>, transform_indices = @transform_1, window_bounds = array<i64: 4, 160, 512>}, {pipeline_mode = #tpu.pipeline_mode<synchronous>, transform_indices = @transform_2, window_bounds = array<i64: 256, 128>}, {transform_indices = @transform_3, window_bounds = array<i64: 2, 128, 16>}]} {
    %c0 = arith.constant 0 : index
    %c0_0 = arith.constant 0 : index
    %c0_1 = arith.constant 0 : index
    %0 = vector.load %arg1[%c0, %c0_0, %c0_1] : memref<2x24x160xbf16, #tpu.memory_space<vmem>>, vector<2x16x160xbf16>
    %1 = vector.shape_cast %0 : vector<2x16x160xbf16> to vector<32x160xbf16>
    %c0_2 = arith.constant 0 : index
    %c0_3 = arith.constant 0 : index
    %c0_4 = arith.constant 0 : index
    %2 = vector.load %arg2[%c0_2, %c0_3, %c0_4] : memref<4x160x512xbf16, #tpu.memory_space<vmem>>, vector<1x160x512xbf16>
    %3 = vector.shape_cast %2 : vector<1x160x512xbf16> to vector<160x512xbf16>
    %cst = arith.constant dense<0.000000e+00> : vector<32x512xf32>
    %4 = tpu.matmul %1, %3, %cst {dimension_numbers = #tpu.dot_dimension_numbers<[1], [0], [0], [1], [0, 0, 1, 1], [], []>} : vector<32x160xbf16>, vector<160x512xbf16>, vector<32x512xf32> -> vector<32x512xf32>
    %c0_5 = arith.constant 0 : index
    %c1 = arith.constant 1 : index
    %c0_6 = arith.constant 0 : index
    %5 = vector.load %arg1[%c0_5, %c1, %c0_6] : memref<2x24x160xbf16, #tpu.memory_space<vmem>>, vector<2x16x160xbf16>
    %6 = vector.shape_cast %5 : vector<2x16x160xbf16> to vector<32x160xbf16>
    %c1_7 = arith.constant 1 : index
    %c0_8 = arith.constant 0 : index
    %c0_9 = arith.constant 0 : index
    %7 = vector.load %arg2[%c1_7, %c0_8, %c0_9] : memref<4x160x512xbf16, #tpu.memory_space<vmem>>, vector<1x160x512xbf16>
    %8 = vector.shape_cast %7 : vector<1x160x512xbf16> to vector<160x512xbf16>
    %cst_10 = arith.constant dense<0.000000e+00> : vector<32x512xf32>
    %9 = tpu.matmul %6, %8, %cst_10 {dimension_numbers = #tpu.dot_dimension_numbers<[1], [0], [0], [1], [0, 0, 1, 1], [], []>} : vector<32x160xbf16>, vector<160x512xbf16>, vector<32x512xf32> -> vector<32x512xf32>
    %10 = arith.addf %4, %9 : vector<32x512xf32>
    %c0_11 = arith.constant 0 : index
    %c2 = arith.constant 2 : index
    %c0_12 = arith.constant 0 : index
    %11 = vector.load %arg1[%c0_11, %c2, %c0_12] : memref<2x24x160xbf16, #tpu.memory_space<vmem>>, vector<2x16x160xbf16>
    %12 = vector.shape_cast %11 : vector<2x16x160xbf16> to vector<32x160xbf16>
    %c2_13 = arith.constant 2 : index
    %c0_14 = arith.constant 0 : index
    %c0_15 = arith.constant 0 : index
    %13 = vector.load %arg2[%c2_13, %c0_14, %c0_15] : memref<4x160x512xbf16, #tpu.memory_space<vmem>>, vector<1x160x512xbf16>
    %14 = vector.shape_cast %13 : vector<1x160x512xbf16> to vector<160x512xbf16>
    %cst_16 = arith.constant dense<0.000000e+00> : vector<32x512xf32>
    %15 = tpu.matmul %12, %14, %cst_16 {dimension_numbers = #tpu.dot_dimension_numbers<[1], [0], [0], [1], [0, 0, 1, 1], [], []>} : vector<32x160xbf16>, vector<160x512xbf16>, vector<32x512xf32> -> vector<32x512xf32>
    %16 = arith.addf %10, %15 : vector<32x512xf32>
    %c0_17 = arith.constant 0 : index
    %c3 = arith.constant 3 : index
    %c0_18 = arith.constant 0 : index
    %17 = vector.load %arg1[%c0_17, %c3, %c0_18] : memref<2x24x160xbf16, #tpu.memory_space<vmem>>, vector<2x16x160xbf16>
    %18 = vector.shape_cast %17 : vector<2x16x160xbf16> to vector<32x160xbf16>
    %c3_19 = arith.constant 3 : index
    %c0_20 = arith.constant 0 : index
    %c0_21 = arith.constant 0 : index
    %19 = vector.load %arg2[%c3_19, %c0_20, %c0_21] : memref<4x160x512xbf16, #tpu.memory_space<vmem>>, vector<1x160x512xbf16>
    %20 = vector.shape_cast %19 : vector<1x160x512xbf16> to vector<160x512xbf16>
    %cst_22 = arith.constant dense<0.000000e+00> : vector<32x512xf32>
    %21 = tpu.matmul %18, %20, %cst_22 {dimension_numbers = #tpu.dot_dimension_numbers<[1], [0], [0], [1], [0, 0, 1, 1], [], []>} : vector<32x160xbf16>, vector<160x512xbf16>, vector<32x512xf32> -> vector<32x512xf32>
    %22 = arith.addf %16, %21 : vector<32x512xf32>
    %23 = vector.extract_strided_slice %22 {offsets = [0, 0], sizes = [32, 256], strides = [1, 1]} : vector<32x512xf32> to vector<32x256xf32>
    %24 = vector.extract_strided_slice %22 {offsets = [0, 256], sizes = [32, 256], strides = [1, 1]} : vector<32x512xf32> to vector<32x256xf32>
    %25 = arith.mulf %23, %23 : vector<32x256xf32>
    %26 = arith.mulf %24, %24 : vector<32x256xf32>
    %27 = arith.addf %25, %26 : vector<32x256xf32>
    %c0_23 = arith.constant 0 : index
    %c0_24 = arith.constant 0 : index
    %28 = vector.load %arg3[%c0_23, %c0_24] : memref<256x128xf32, #tpu.memory_space<vmem>>, vector<256x128xf32>
    %cst_25 = arith.constant dense<0.000000e+00> : vector<32x128xf32>
    %29 = tpu.matmul %27, %28, %cst_25 {dimension_numbers = #tpu.dot_dimension_numbers<[1], [0], [0], [1], [0, 0, 1, 1], [], []>} : vector<32x256xf32>, vector<256x128xf32>, vector<32x128xf32> -> vector<32x128xf32>
    %cst_26 = arith.constant 9.99999997E-7 : f32
    %30 = vector.broadcast %cst_26 : f32 to vector<32x128xf32>
    %31 = arith.addf %29, %30 : vector<32x128xf32>
    %32 = math.log %31 : vector<32x128xf32>
    %33 = vector.shape_cast %32 : vector<32x128xf32> to vector<2x16x128xf32>
    %cst_27 = arith.constant dense<0.000000e+00> : vector<2x128xf32>
    %34 = vector.multi_reduction <add>, %33, %cst_27 [1] : vector<2x16x128xf32> to vector<2x128xf32>
    %35 = vector.shape_cast %34 : vector<2x128xf32> to vector<2x1x128xf32>
    %cst_28 = arith.constant 6.250000e-02 : f32
    %36 = vector.broadcast %cst_28 : f32 to vector<2x1x128xf32>
    %37 = arith.mulf %35, %36 : vector<2x1x128xf32>
    %38 = vector.broadcast %37 : vector<2x1x128xf32> to vector<2x16x128xf32>
    %39 = arith.subf %33, %38 : vector<2x16x128xf32>
    %40 = arith.mulf %39, %39 : vector<2x16x128xf32>
    %cst_29 = arith.constant dense<0.000000e+00> : vector<2x128xf32>
    %41 = vector.multi_reduction <add>, %40, %cst_29 [1] : vector<2x16x128xf32> to vector<2x128xf32>
    %42 = vector.shape_cast %41 : vector<2x128xf32> to vector<2x1x128xf32>
    %cst_30 = arith.constant 6.250000e-02 : f32
    %43 = vector.broadcast %cst_30 : f32 to vector<2x1x128xf32>
    %44 = arith.mulf %42, %43 : vector<2x1x128xf32>
    %cst_31 = arith.constant 9.99999974E-6 : f32
    %45 = vector.broadcast %cst_31 : f32 to vector<2x1x128xf32>
    %46 = arith.addf %44, %45 : vector<2x1x128xf32>
    %47 = math.rsqrt %46 : vector<2x1x128xf32>
    %48 = vector.broadcast %47 : vector<2x1x128xf32> to vector<2x16x128xf32>
    %49 = arith.mulf %39, %48 : vector<2x16x128xf32>
    %50 = vector.extract_strided_slice %49 {offsets = [0, 0, 0], sizes = [1, 16, 128], strides = [1, 1, 1]} : vector<2x16x128xf32> to vector<1x16x128xf32>
    %51 = vector.shape_cast %50 : vector<1x16x128xf32> to vector<16x128xf32>
    %52 = tpu.transpose %51, [1, 0] : vector<16x128xf32> -> vector<128x16xf32>
    %c0_32 = arith.constant 0 : index
    %c0_33 = arith.constant 0 : index
    %c0_34 = arith.constant 0 : index
    %53 = vector.load %arg4[%c0_32, %c0_33, %c0_34] : memref<2x128x16xf32, #tpu.memory_space<vmem>>, vector<1x128x16xf32>
    %54 = vector.shape_cast %53 : vector<1x128x16xf32> to vector<128x16xf32>
    %55 = vector.shape_cast %52 : vector<128x16xf32> to vector<1x128x16xf32>
    tpu.vector_store %arg4[%c0_32, %c0_33, %c0_34], %55 {strides = array<i32>} : memref<2x128x16xf32, #tpu.memory_space<vmem>>, vector<1x128x16xf32>,
    %56 = vector.extract_strided_slice %49 {offsets = [1, 0, 0], sizes = [1, 16, 128], strides = [1, 1, 1]} : vector<2x16x128xf32> to vector<1x16x128xf32>
    %57 = vector.shape_cast %56 : vector<1x16x128xf32> to vector<16x128xf32>
    %58 = tpu.transpose %57, [1, 0] : vector<16x128xf32> -> vector<128x16xf32>
    %c1_35 = arith.constant 1 : index
    %c0_36 = arith.constant 0 : index
    %c0_37 = arith.constant 0 : index
    %59 = vector.load %arg4[%c1_35, %c0_36, %c0_37] : memref<2x128x16xf32, #tpu.memory_space<vmem>>, vector<1x128x16xf32>
    %60 = vector.shape_cast %59 : vector<1x128x16xf32> to vector<128x16xf32>
    %61 = vector.shape_cast %58 : vector<128x16xf32> to vector<1x128x16xf32>
    tpu.vector_store %arg4[%c1_35, %c0_36, %c0_37], %61 {strides = array<i32>} : memref<2x128x16xf32, #tpu.memory_space<vmem>>, vector<1x128x16xf32>,
    return
  }
  func.func @transform_0(%arg0: i32) -> (i32, i32, i32) {
    %c0_i32 = arith.constant 0 : i32
    %c0_i32_0 = arith.constant 0 : i32
    %c0_i32_1 = arith.constant 0 : i32
    return %arg0, %c0_i32, %c0_i32_0 : i32, i32, i32
  }
  func.func @transform_1(%arg0: i32) -> (i32, i32, i32) {
    %c0_i32 = arith.constant 0 : i32
    %c0_i32_0 = arith.constant 0 : i32
    %c0_i32_1 = arith.constant 0 : i32
    %c0_i32_2 = arith.constant 0 : i32
    return %c0_i32, %c0_i32_0, %c0_i32_1 : i32, i32, i32
  }
  func.func @transform_2(%arg0: i32) -> (i32, i32) {
    %c0_i32 = arith.constant 0 : i32
    %c0_i32_0 = arith.constant 0 : i32
    %c0_i32_1 = arith.constant 0 : i32
    return %c0_i32, %c0_i32_0 : i32, i32
  }
  func.func @transform_3(%arg0: i32) -> (i32, i32, i32) {
    %c0_i32 = arith.constant 0 : i32
    %c0_i32_0 = arith.constant 0 : i32
    %c0_i32_1 = arith.constant 0 : i32
    return %arg0, %c0_i32, %c0_i32_0 : i32, i32, i32
  }
}

</mosaic_0001>

<llo_original>
// kernel: tpu_custom_call.1
$region0: #{tpu_custom_call.1}
  #allocation0 [shape = 'u32[]', space=smem, size = 0x4, offset = 0x4, fixed_abs, tag = 'smem constant byte address 0x4 - core index']
  #allocation1 [shape = 'u32[144,128]{1,0:T(1,128)}', space=vmem, size = 0x12000, scoped, tag = 'internal scratch']
  %s0 = inlined_call_operand.hbm [shape: bf16[2,24,160], index: 0, kind: input, shape index: {}]
  %s1 = inlined_call_operand.hbm [shape: bf16[4,160,512], index: 1, kind: input, shape index: {}]
  %s2 = inlined_call_operand.hbm [shape: f32[256,128], index: 2, kind: input, shape index: {}]
  %s3 = inlined_call_operand.vmem [shape: f32[2,128,16], index: 3, kind: output, shape index: {}]
  %s4 = sld [smem:[#allocation0]]
  $region34: #{tpu_custom_call.1} parent=0
    _
  %s6 = ssub.s32 1, %s4
  %s7 = scalar_select 0, %s6, %s4
  $region1: #{tpu_custom_call.1} parent=0
    #allocation2 [shape = 'u8[24576]{0}', space=vmem, size = 0x6000, scoped, tag = 'input window, operand 0, single buffered']
    #allocation3 [shape = 's32[1]{0}', space=sflag, size = 0x4, scoped, tag = 'scoped memory for tpu_custom_call.1']
    #allocation4 [shape = 'u8[655360]{0}', space=vmem, size = 0xa0000, scoped, tag = 'input window, operand 1, single buffered']
    #allocation5 [shape = 's32[1]{0}', space=sflag, size = 0x4, scoped, tag = 'scoped memory for tpu_custom_call.1']
    #allocation6 [shape = 'u8[131072]{0}', space=vmem, size = 0x20000, scoped, tag = 'input window, operand 2, single buffered']
    %8 = vsyncpa [#allocation3], 0
    %9 = vsyncpa [#allocation5], 0
    // Predicated region
    $region2: #{tpu_custom_call.1} parent=1 // pred_check
      _
    $region3: #{tpu_custom_call.1} parent=1 // pred_check_branch
      %11 = sbr.rel (0) target = $region5
    $region4: #{tpu_custom_call.1} parent=1 // pred_region
      %s13 = ssub.s32 768, 768
      %14 = vsyncadd [#allocation3], %s13
      %s15 = sshll.u32 [#allocation2], 4
      %s16 = int_to_ptr.vmem [resolvable:$true] %s15
      %21 = dma.hbm_to_vmem [thread:$0]  %s0, 768, %s16, [#allocation3], 128, 128, 8
    $region5: #{tpu_custom_call.1} parent=1 // pred_fallthru
      _
    // Predicated region
    $region6: #{tpu_custom_call.1} parent=1 // pred_check
      _
    $region7: #{tpu_custom_call.1} parent=1 // pred_check_branch
      %23 = sbr.rel (0) target = $region9
    $region8: #{tpu_custom_call.1} parent=1 // pred_region
      %s25 = ssub.s32 20480, 20480
      %26 = vsyncadd [#allocation5], %s25
      %s27 = sshll.u32 [#allocation4], 4
      %s28 = int_to_ptr.vmem [resolvable:$true] %s27
      %33 = dma.hbm_to_vmem [thread:$0]  %s1, 20480, %s28, [#allocation5], 256, 256, 16
    $region9: #{tpu_custom_call.1} parent=1 // pred_fallthru
      _
    // Predicated region
    $region10: #{tpu_custom_call.1} parent=1 // pred_check
      _
    $region11: #{tpu_custom_call.1} parent=1 // pred_check_branch
      %35 = sbr.rel (0) target = $region13
    $region12: #{tpu_custom_call.1} parent=1 // pred_region
      %s37 = ssub.s32 4096, 4096
      %38 = vsyncadd [#allocation5], %s37
      %s39 = sshll.u32 [#allocation6], 4
      %s40 = int_to_ptr.vmem [resolvable:$true] %s39
      %45 = dma.hbm_to_vmem [thread:$0]  %s2, 4096, %s40, [#allocation5], 128, 128, 8
    $region13: #{tpu_custom_call.1} parent=1 // pred_fallthru
      _
    // Predicated region
    $region14: #{tpu_custom_call.1} parent=1 // pred_check
      _
    $region15: #{tpu_custom_call.1} parent=1 // pred_check_branch
      %47 = sbr.rel (0) target = $region17
    $region16: #{tpu_custom_call.1} parent=1 // pred_region
      %48 = dma.done [#allocation3], 768
    $region17: #{tpu_custom_call.1} parent=1 // pred_fallthru
      _
    // Predicated region
    $region18: #{tpu_custom_call.1} parent=1 // pred_check
      _
    $region19: #{tpu_custom_call.1} parent=1 // pred_check_branch
      %50 = sbr.rel (0) target = $region21
    $region20: #{tpu_custom_call.1} parent=1 // pred_region
      %51 = dma.done [#allocation5], 20480
    $region21: #{tpu_custom_call.1} parent=1 // pred_fallthru
      _
    // Predicated region
    $region22: #{tpu_custom_call.1} parent=1 // pred_check
      _
    $region23: #{tpu_custom_call.1} parent=1 // pred_check_branch
      %53 = sbr.rel (0) target = $region25
    $region24: #{tpu_custom_call.1} parent=1 // pred_region
      %54 = dma.done [#allocation5], 4096
    $region25: #{tpu_custom_call.1} parent=1 // pred_fallthru
      _
    %v56 = vld [vmem:[#allocation2] sm:$0xff]
    %v57 = vld [vmem:[#allocation2 + $0x8] sm:$0xff]
    %v58 = vld [vmem:[#allocation2 + $0x18] sm:$0xff]
    %v59 = vld [vmem:[#allocation2 + $0x20] sm:$0xff]
    %v60 = vld [vmem:[#allocation4] sm:$0xff]
    %v61 = vld [vmem:[#allocation4 + $0x8] sm:$0xff]
    %v62 = vld [vmem:[#allocation4 + $0x10] sm:$0xff]
    %v63 = vld [vmem:[#allocation4 + $0x18] sm:$0xff]
    %v64 = vld [vmem:[#allocation4 + $0x20] sm:$0xff]
    %v65 = vld [vmem:[#allocation4 + $0x28] sm:$0xff]
    %v66 = vld [vmem:[#allocation4 + $0x30] sm:$0xff]
    %v67 = vld [vmem:[#allocation4 + $0x38] sm:$0xff]
    %v68 = vld [vmem:[#allocation4 + $0x40] sm:$0xff]
    %v69 = vld [vmem:[#allocation4 + $0x48] sm:$0xff]
    %v70 = vld [vmem:[#allocation4 + $0x50] sm:$0xff]
    %v71 = vld [vmem:[#allocation4 + $0x58] sm:$0xff]
    %v72 = vld [vmem:[#allocation4 + $0x60] sm:$0xff]
    %v73 = vld [vmem:[#allocation4 + $0x68] sm:$0xff]
    %v74 = vld [vmem:[#allocation4 + $0x70] sm:$0xff]
    %v75 = vld [vmem:[#allocation4 + $0x78] sm:$0xff]
    %v76 = vld [vmem:[#allocation4 + $0x80] sm:$0xff]
    %v77 = vld [vmem:[#allocation4 + $0x88] sm:$0xff]
    %v78 = vld [vmem:[#allocation4 + $0x90] sm:$0xff]
    %v79 = vld [vmem:[#allocation4 + $0x98] sm:$0xff]
    %v80 = vld [vmem:[#allocation4 + $0xa0] sm:$0xff]
    %v81 = vld [vmem:[#allocation4 + $0xa8] sm:$0xff]
    %v82 = vld [vmem:[#allocation4 + $0xb0] sm:$0xff]
    %v83 = vld [vmem:[#allocation4 + $0xb8] sm:$0xff]
    %v84 = vld [vmem:[#allocation4 + $0xc0] sm:$0xff]
    %v85 = vld [vmem:[#allocation4 + $0xc8] sm:$0xff]
    %v86 = vld [vmem:[#allocation4 + $0xd0] sm:$0xff]
    %v87 = vld [vmem:[#allocation4 + $0xd8] sm:$0xff]
    %v88 = vld [vmem:[#allocation4 + $0xe0] sm:$0xff]
    %v89 = vld [vmem:[#allocation4 + $0xe8] sm:$0xff]
    %v90 = vld [vmem:[#allocation4 + $0xf0] sm:$0xff]
    %v91 = vld [vmem:[#allocation4 + $0xf8] sm:$0xff]
    %v92 = vld [vmem:[#allocation4 + $0x100] sm:$0xff]
    %v93 = vld [vmem:[#allocation4 + $0x108] sm:$0xff]
    %v94 = vld [vmem:[#allocation4 + $0x110] sm:$0xff]
    %v95 = vld [vmem:[#allocation4 + $0x118] sm:$0xff]
    %v96 = vld [vmem:[#allocation4 + $0x120] sm:$0xff]
    %v97 = vld [vmem:[#allocation4 + $0x128] sm:$0xff]
    %v98 = vld [vmem:[#allocation4 + $0x130] sm:$0xff]
    %v99 = vld [vmem:[#allocation4 + $0x138] sm:$0xff]
    %v100 = vld [vmem:[#allocation2 + $0x10] sm:$0x11]
    %v101 = vld [vmem:[#allocation2 + $0x28] sm:$0x11]
    %vm102 = vsmask.f32 3328
    %vm103 = vsmask.f32 7440
    %vm104 = vmor %vm102, %vm103
    %v106 = vshrl.u32 %v56, 16
    %v108 = vrot.slane %v106, 4
    %v109 = vshll.u32 %v56, 16
    %v111 = vrot.slane %v109, 5
    %v112 = vor.u32 %v108, %v111
    %v113 = vrot.slane %v112, 4
    %v115 = vshll.u32 %v57, 16
    %v117 = vrot.slane %v115, 5
    %v118 = vsel %vm104, %v113, %v117
    %v119 = vshrl.u32 %v57, 16
    %v121 = vrot.slane %v119, 4
    %v122 = vor.u32 %v121, %v117
    %v123 = vrot.slane %v122, 4
    %v125 = vshll.u32 %v100, 16
    %v127 = vrot.slane %v125, 5
    %v128 = vsel %vm104, %v123, %v127
    %v130 = vshrl.u32 %v58, 16
    %v132 = vrot.slane %v130, 4
    %v133 = vshll.u32 %v58, 16
    %v135 = vrot.slane %v133, 5
    %v136 = vor.u32 %v132, %v135
    %v137 = vrot.slane %v136, 4
    %v139 = vshll.u32 %v59, 16
    %v141 = vrot.slane %v139, 5
    %v142 = vsel %vm104, %v137, %v141
    %v143 = vshrl.u32 %v59, 16
    %v145 = vrot.slane %v143, 4
    %v146 = vor.u32 %v145, %v141
    %v147 = vrot.slane %v146, 4
    %v149 = vshll.u32 %v101, 16
    %v151 = vrot.slane %v149, 5
    %v152 = vsel %vm104, %v147, %v151
    %s153 = scalar_lea.vmem [#allocation4], 320
    %v154 = vld [vmem:[%s153] sm:$0xff]
    %v155 = vld [vmem:[%s153 + $0x8] sm:$0xff]
    %v156 = vld [vmem:[%s153 + $0x10] sm:$0xff]
    %v157 = vld [vmem:[%s153 + $0x18] sm:$0xff]
    %v158 = vld [vmem:[%s153 + $0x20] sm:$0xff]
    %v159 = vld [vmem:[%s153 + $0x28] sm:$0xff]
    %v160 = vld [vmem:[%s153 + $0x30] sm:$0xff]
    %v161 = vld [vmem:[%s153 + $0x38] sm:$0xff]
    %v162 = vld [vmem:[%s153 + $0x40] sm:$0xff]
    %v163 = vld [vmem:[%s153 + $0x48] sm:$0xff]
    %v164 = vld [vmem:[%s153 + $0x50] sm:$0xff]
    %v165 = vld [vmem:[%s153 + $0x58] sm:$0xff]
    %v166 = vld [vmem:[%s153 + $0x60] sm:$0xff]
    %v167 = vld [vmem:[%s153 + $0x68] sm:$0xff]
    %v168 = vld [vmem:[%s153 + $0x70] sm:$0xff]
    %v169 = vld [vmem:[%s153 + $0x78] sm:$0xff]
    %v170 = vld [vmem:[%s153 + $0x80] sm:$0xff]
    %v171 = vld [vmem:[%s153 + $0x88] sm:$0xff]
    %v172 = vld [vmem:[%s153 + $0x90] sm:$0xff]
    %v173 = vld [vmem:[%s153 + $0x98] sm:$0xff]
    %v174 = vld [vmem:[%s153 + $0xa0] sm:$0xff]
    %v175 = vld [vmem:[%s153 + $0xa8] sm:$0xff]
    %v176 = vld [vmem:[%s153 + $0xb0] sm:$0xff]
    %v177 = vld [vmem:[%s153 + $0xb8] sm:$0xff]
    %v178 = vld [vmem:[%s153 + $0xc0] sm:$0xff]
    %v179 = vld [vmem:[%s153 + $0xc8] sm:$0xff]
    %v180 = vld [vmem:[%s153 + $0xd0] sm:$0xff]
    %v181 = vld [vmem:[%s153 + $0xd8] sm:$0xff]
    %v182 = vld [vmem:[%s153 + $0xe0] sm:$0xff]
    %v183 = vld [vmem:[%s153 + $0xe8] sm:$0xff]
    %v184 = vld [vmem:[%s153 + $0xf0] sm:$0xff]
    %v185 = vld [vmem:[%s153 + $0xf8] sm:$0xff]
    %v186 = vld [vmem:[%s153 + $0x100] sm:$0xff]
    %v187 = vld [vmem:[%s153 + $0x108] sm:$0xff]
    %v188 = vld [vmem:[%s153 + $0x110] sm:$0xff]
    %v189 = vld [vmem:[%s153 + $0x118] sm:$0xff]
    %v190 = vld [vmem:[%s153 + $0x120] sm:$0xff]
    %v191 = vld [vmem:[%s153 + $0x128] sm:$0xff]
    %v192 = vld [vmem:[%s153 + $0x130] sm:$0xff]
    %v193 = vld [vmem:[%s153 + $0x138] sm:$0xff]
    %v194 = vunpack.c.l.b16 %v118
    %v195 = vunpack.c.h.b16 %v118
    %v196 = vunpack.c.l.b16 %v128
    %v197 = vunpack.c.h.b16 %v128
    %v198 = vunpack.c.l.b16 %v142
    %v199 = vunpack.c.h.b16 %v142
    %v200 = vunpack.c.l.b16 %v152
    %v201 = vunpack.c.h.b16 %v152
    %v202 = vpack.c.b16 %v196, %v194
    %v203 = vpack.c.b16 %v197, %v195
    %v204 = vpack.c.b16 %v200, %v198
    %v205 = vpack.c.b16 %v201, %v199
    %v248 = vunpack.c.l.b16 %v154
    %v249 = vunpack.c.h.b16 %v154
    %v250 = vunpack.c.l.b16 %v155
    %v251 = vunpack.c.h.b16 %v155
    %v252 = vunpack.c.l.b16 %v156
    %v253 = vunpack.c.h.b16 %v156
    %v254 = vunpack.c.l.b16 %v157
    %v255 = vunpack.c.h.b16 %v157
    %v256 = vunpack.c.l.b16 %v158
    %v257 = vunpack.c.h.b16 %v158
    %v258 = vunpack.c.l.b16 %v159
    %v259 = vunpack.c.h.b16 %v159
    %v260 = vunpack.c.l.b16 %v160
    %v261 = vunpack.c.h.b16 %v160
    %v262 = vunpack.c.l.b16 %v161
    %v263 = vunpack.c.h.b16 %v161
    %v264 = vunpack.c.l.b16 %v162
    %v265 = vunpack.c.h.b16 %v162
    %v266 = vunpack.c.l.b16 %v163
    %v267 = vunpack.c.h.b16 %v163
    %v268 = vunpack.c.l.b16 %v164
    %v269 = vunpack.c.h.b16 %v164
    %v270 = vunpack.c.l.b16 %v165
    %v271 = vunpack.c.h.b16 %v165
    %v272 = vunpack.c.l.b16 %v166
    %v273 = vunpack.c.h.b16 %v166
    %v274 = vunpack.c.l.b16 %v167
    %v275 = vunpack.c.h.b16 %v167
    %v276 = vunpack.c.l.b16 %v168
    %v277 = vunpack.c.h.b16 %v168
    %v278 = vunpack.c.l.b16 %v169
    %v279 = vunpack.c.h.b16 %v169
    %v280 = vunpack.c.l.b16 %v170
    %v281 = vunpack.c.h.b16 %v170
    %v282 = vunpack.c.l.b16 %v171
    %v283 = vunpack.c.h.b16 %v171
    %v284 = vunpack.c.l.b16 %v172
    %v285 = vunpack.c.h.b16 %v172
    %v286 = vunpack.c.l.b16 %v173
    %v287 = vunpack.c.h.b16 %v173
    %v288 = vunpack.c.l.b16 %v174
    %v289 = vunpack.c.h.b16 %v174
    %v290 = vunpack.c.l.b16 %v175
    %v291 = vunpack.c.h.b16 %v175
    %v292 = vunpack.c.l.b16 %v176
    %v293 = vunpack.c.h.b16 %v176
    %v294 = vunpack.c.l.b16 %v177
    %v295 = vunpack.c.h.b16 %v177
    %v296 = vunpack.c.l.b16 %v178
    %v297 = vunpack.c.h.b16 %v178
    %v298 = vunpack.c.l.b16 %v179
    %v299 = vunpack.c.h.b16 %v179
    %v300 = vunpack.c.l.b16 %v180
    %v301 = vunpack.c.h.b16 %v180
    %v302 = vunpack.c.l.b16 %v181
    %v303 = vunpack.c.h.b16 %v181
    %v304 = vunpack.c.l.b16 %v182
    %v305 = vunpack.c.h.b16 %v182
    %v306 = vunpack.c.l.b16 %v183
    %v307 = vunpack.c.h.b16 %v183
    %v308 = vunpack.c.l.b16 %v184
    %v309 = vunpack.c.h.b16 %v184
    %v310 = vunpack.c.l.b16 %v185
    %v311 = vunpack.c.h.b16 %v185
    %v312 = vunpack.c.l.b16 %v186
    %v313 = vunpack.c.h.b16 %v186
    %v314 = vunpack.c.l.b16 %v187
    %v315 = vunpack.c.h.b16 %v187
    %v316 = vunpack.c.l.b16 %v188
    %v317 = vunpack.c.h.b16 %v188
    %v318 = vunpack.c.l.b16 %v189
    %v319 = vunpack.c.h.b16 %v189
    %v320 = vunpack.c.l.b16 %v190
    %v321 = vunpack.c.h.b16 %v190
    %v322 = vunpack.c.l.b16 %v191
    %v323 = vunpack.c.h.b16 %v191
    %v324 = vunpack.c.l.b16 %v192
    %v325 = vunpack.c.h.b16 %v192
    %v326 = vunpack.c.l.b16 %v193
    %v327 = vunpack.c.h.b16 %v193
    %v328 = vpack.c.b16 %v252, %v248
    %v329 = vpack.c.b16 %v253, %v249
    %v330 = vpack.c.b16 %v254, %v250
    %v331 = vpack.c.b16 %v255, %v251
    %v332 = vpack.c.b16 %v260, %v256
    %v333 = vpack.c.b16 %v261, %v257
    %v334 = vpack.c.b16 %v262, %v258
    %v335 = vpack.c.b16 %v263, %v259
    %v336 = vpack.c.b16 %v268, %v264
    %v337 = vpack.c.b16 %v269, %v265
    %v338 = vpack.c.b16 %v270, %v266
    %v339 = vpack.c.b16 %v271, %v267
    %v340 = vpack.c.b16 %v276, %v272
    %v341 = vpack.c.b16 %v277, %v273
    %v342 = vpack.c.b16 %v278, %v274
    %v343 = vpack.c.b16 %v279, %v275
    %v344 = vpack.c.b16 %v284, %v280
    %v345 = vpack.c.b16 %v285, %v281
    %v346 = vpack.c.b16 %v286, %v282
    %v347 = vpack.c.b16 %v287, %v283
    %v348 = vpack.c.b16 %v292, %v288
    %v349 = vpack.c.b16 %v293, %v289
    %v350 = vpack.c.b16 %v294, %v290
    %v351 = vpack.c.b16 %v295, %v291
    %v352 = vpack.c.b16 %v300, %v296
    %v353 = vpack.c.b16 %v301, %v297
    %v354 = vpack.c.b16 %v302, %v298
    %v355 = vpack.c.b16 %v303, %v299
    %v356 = vpack.c.b16 %v308, %v304
    %v357 = vpack.c.b16 %v309, %v305
    %v358 = vpack.c.b16 %v310, %v306
    %v359 = vpack.c.b16 %v311, %v307
    %v360 = vpack.c.b16 %v316, %v312
    %v361 = vpack.c.b16 %v317, %v313
    %v362 = vpack.c.b16 %v318, %v314
    %v363 = vpack.c.b16 %v319, %v315
    %v364 = vpack.c.b16 %v324, %v320
    %v365 = vpack.c.b16 %v325, %v321
    %v366 = vpack.c.b16 %v326, %v322
    %v367 = vpack.c.b16 %v327, %v323
    %vm408 = vcmask 261120
    %v410 = vsel %vm408, %v203, 0
    %v413 = vsel %vm408, %v205, 0
    %415 = vmatprep.subr.bf16.mxu0 %v329
    %416 = vmatpush1.bf16.msra.mxu0 %v328
    %417 = vmatprep.subr.bf16.mxu0 %v333
    %418 = vmatpush1.bf16.msra.mxu0 %v332
    %419 = vmatprep.subr.bf16.mxu0 %v337
    %420 = vmatpush1.bf16.msra.mxu0 %v336
    %421 = vmatprep.subr.bf16.mxu0 %v341
    %422 = vmatpush1.bf16.msra.mxu0 %v340
    %423 = vmatprep.subr.bf16.mxu0 %v345
    %424 = vmatpush1.bf16.msra.mxu0 %v344
    %425 = vmatprep.subr.bf16.mxu0 %v349
    %426 = vmatpush1.bf16.msra.mxu0 %v348
    %427 = vmatprep.subr.bf16.mxu0 %v353
    %428 = vmatpush1.bf16.msra.mxu0 %v352
    %429 = vmatprep.subr.bf16.mxu0 %v357
    %430 = vmatpush1.bf16.msra.mxu0 %v356
    %431 = vmatprep.subr.bf16.mxu0 %v361
    %432 = vmatpush1.bf16.msra.mxu0 %v360
    %433 = vmatprep.subr.bf16.mxu0 %v365
    %434 = vmatpush1.bf16.msra.mxu0 %v364
    %435 = vmatprep.subr.bf16.mxu0 0
    %436 = vmatpush1.bf16.msra.mxu0 0
    %437 = vmatprep.subr.bf16.mxu0 0
    %438 = vmatpush1.bf16.msra.mxu0 0
    %439 = vmatprep.subr.bf16.mxu0 0
    %440 = vmatpush1.bf16.msra.mxu0 0
    %441 = vmatprep.subr.bf16.mxu0 0
    %442 = vmatpush1.bf16.msra.mxu0 0
    %443 = vmatprep.subr.bf16.mxu0 0
    %444 = vmatpush1.bf16.msra.mxu0 0
    %445 = vmatprep.subr.bf16.mxu0 0
    %446 = vmatpush1.bf16.msra.mxu0 0
    %447 = vmatprep.mubr.bf16.mxu0 %v410
    %448 = vmatmul.mubr.bf16.gmra.mrb[0].mxu0 %v202
    %v449 = vpop.f32.mrb[0].mxu0
    %v450 = vadd.f32 0.0, %v449
    %v451 = vpop.f32.mrb[0].mxu0
    %v452 = vadd.f32 0.0, %v451
    %v453 = vpop.f32.mrb[0].mxu0
    %v454 = vadd.f32 0.0, %v453
    %v455 = vpop.f32.mrb[0].mxu0
    %v456 = vadd.f32 0.0, %v455
    %457 = vmatprep.mubr.bf16.mxu0 %v413
    %458 = vmatmul.mubr.bf16.gmra.mrb[0].mxu0 %v204
    %v459 = vpop.f32.mrb[0].mxu0
    %v460 = vadd.f32 0.0, %v459
    %v461 = vpop.f32.mrb[0].mxu0
    %v462 = vadd.f32 0.0, %v461
    %v463 = vpop.f32.mrb[0].mxu0
    %v464 = vadd.f32 0.0, %v463
    %v465 = vpop.f32.mrb[0].mxu0
    %v466 = vadd.f32 0.0, %v465
    %467 = vdwg.mxu0
    %468 = vmatprep.subr.bf16.mxu0 %v331
    %469 = vmatpush1.bf16.msra.mxu0 %v330
    %470 = vmatprep.subr.bf16.mxu0 %v335
    %471 = vmatpush1.bf16.msra.mxu0 %v334
    %472 = vmatprep.subr.bf16.mxu0 %v339
    %473 = vmatpush1.bf16.msra.mxu0 %v338
    %474 = vmatprep.subr.bf16.mxu0 %v343
    %475 = vmatpush1.bf16.msra.mxu0 %v342
    %476 = vmatprep.subr.bf16.mxu0 %v347
    %477 = vmatpush1.bf16.msra.mxu0 %v346
    %478 = vmatprep.subr.bf16.mxu0 %v351
    %479 = vmatpush1.bf16.msra.mxu0 %v350
    %480 = vmatprep.subr.bf16.mxu0 %v355
    %481 = vmatpush1.bf16.msra.mxu0 %v354
    %482 = vmatprep.subr.bf16.mxu0 %v359
    %483 = vmatpush1.bf16.msra.mxu0 %v358
    %484 = vmatprep.subr.bf16.mxu0 %v363
    %485 = vmatpush1.bf16.msra.mxu0 %v362
    %486 = vmatprep.subr.bf16.mxu0 %v367
    %487 = vmatpush1.bf16.msra.mxu0 %v366
    %488 = vmatprep.subr.bf16.mxu0 0
    %489 = vmatpush1.bf16.msra.mxu0 0
    %490 = vmatprep.subr.bf16.mxu0 0
    %491 = vmatpush1.bf16.msra.mxu0 0
    %492 = vmatprep.subr.bf16.mxu0 0
    %493 = vmatpush1.bf16.msra.mxu0 0
    %494 = vmatprep.subr.bf16.mxu0 0
    %495 = vmatpush1.bf16.msra.mxu0 0
    %496 = vmatprep.subr.bf16.mxu0 0
    %497 = vmatpush1.bf16.msra.mxu0 0
    %498 = vmatprep.subr.bf16.mxu0 0
    %499 = vmatpush1.bf16.msra.mxu0 0
    %500 = vmatprep.mubr.bf16.mxu0 %v410
    %501 = vmatmul.mubr.bf16.gmra.mrb[0].mxu0 %v202
    %v502 = vpop.f32.mrb[0].mxu0
    %v503 = vadd.f32 0.0, %v502
    %v504 = vpop.f32.mrb[0].mxu0
    %v505 = vadd.f32 0.0, %v504
    %v506 = vpop.f32.mrb[0].mxu0
    %v507 = vadd.f32 0.0, %v506
    %v508 = vpop.f32.mrb[0].mxu0
    %v509 = vadd.f32 0.0, %v508
    %510 = vmatprep.mubr.bf16.mxu0 %v413
    %511 = vmatmul.mubr.bf16.gmra.mrb[0].mxu0 %v204
    %v512 = vpop.f32.mrb[0].mxu0
    %v513 = vadd.f32 0.0, %v512
    %v514 = vpop.f32.mrb[0].mxu0
    %v515 = vadd.f32 0.0, %v514
    %v516 = vpop.f32.mrb[0].mxu0
    %v517 = vadd.f32 0.0, %v516
    %v518 = vpop.f32.mrb[0].mxu0
    %v519 = vadd.f32 0.0, %v518
    %520 = vdwg.mxu0
    %v525 = vunpack.c.l.b16 %v56
    %v526 = vunpack.c.h.b16 %v56
    %v527 = vunpack.c.l.b16 %v57
    %v528 = vunpack.c.h.b16 %v57
    %v529 = vunpack.c.l.b16 %v58
    %v530 = vunpack.c.h.b16 %v58
    %v531 = vunpack.c.l.b16 %v59
    %v532 = vunpack.c.h.b16 %v59
    %v533 = vpack.c.b16 %v527, %v525
    %v534 = vpack.c.b16 %v528, %v526
    %v535 = vpack.c.b16 %v531, %v529
    %v536 = vpack.c.b16 %v532, %v530
    %v579 = vunpack.c.l.b16 %v60
    %v580 = vunpack.c.h.b16 %v60
    %v581 = vunpack.c.l.b16 %v61
    %v582 = vunpack.c.h.b16 %v61
    %v583 = vunpack.c.l.b16 %v62
    %v584 = vunpack.c.h.b16 %v62
    %v585 = vunpack.c.l.b16 %v63
    %v586 = vunpack.c.h.b16 %v63
    %v587 = vunpack.c.l.b16 %v64
    %v588 = vunpack.c.h.b16 %v64
    %v589 = vunpack.c.l.b16 %v65
    %v590 = vunpack.c.h.b16 %v65
    %v591 = vunpack.c.l.b16 %v66
    %v592 = vunpack.c.h.b16 %v66
    %v593 = vunpack.c.l.b16 %v67
    %v594 = vunpack.c.h.b16 %v67
    %v595 = vunpack.c.l.b16 %v68
    %v596 = vunpack.c.h.b16 %v68
    %v597 = vunpack.c.l.b16 %v69
    %v598 = vunpack.c.h.b16 %v69
    %v599 = vunpack.c.l.b16 %v70
    %v600 = vunpack.c.h.b16 %v70
    %v601 = vunpack.c.l.b16 %v71
    %v602 = vunpack.c.h.b16 %v71
    %v603 = vunpack.c.l.b16 %v72
    %v604 = vunpack.c.h.b16 %v72
    %v605 = vunpack.c.l.b16 %v73
    %v606 = vunpack.c.h.b16 %v73
    %v607 = vunpack.c.l.b16 %v74
    %v608 = vunpack.c.h.b16 %v74
    %v609 = vunpack.c.l.b16 %v75
    %v610 = vunpack.c.h.b16 %v75
    %v611 = vunpack.c.l.b16 %v76
    %v612 = vunpack.c.h.b16 %v76
    %v613 = vunpack.c.l.b16 %v77
    %v614 = vunpack.c.h.b16 %v77
    %v615 = vunpack.c.l.b16 %v78
    %v616 = vunpack.c.h.b16 %v78
    %v617 = vunpack.c.l.b16 %v79
    %v618 = vunpack.c.h.b16 %v79
    %v619 = vunpack.c.l.b16 %v80
    %v620 = vunpack.c.h.b16 %v80
    %v621 = vunpack.c.l.b16 %v81
    %v622 = vunpack.c.h.b16 %v81
    %v623 = vunpack.c.l.b16 %v82
    %v624 = vunpack.c.h.b16 %v82
    %v625 = vunpack.c.l.b16 %v83
    %v626 = vunpack.c.h.b16 %v83
    %v627 = vunpack.c.l.b16 %v84
    %v628 = vunpack.c.h.b16 %v84
    %v629 = vunpack.c.l.b16 %v85
    %v630 = vunpack.c.h.b16 %v85
    %v631 = vunpack.c.l.b16 %v86
    %v632 = vunpack.c.h.b16 %v86
    %v633 = vunpack.c.l.b16 %v87
    %v634 = vunpack.c.h.b16 %v87
    %v635 = vunpack.c.l.b16 %v88
    %v636 = vunpack.c.h.b16 %v88
    %v637 = vunpack.c.l.b16 %v89
    %v638 = vunpack.c.h.b16 %v89
    %v639 = vunpack.c.l.b16 %v90
    %v640 = vunpack.c.h.b16 %v90
    %v641 = vunpack.c.l.b16 %v91
    %v642 = vunpack.c.h.b16 %v91
    %v643 = vunpack.c.l.b16 %v92
    %v644 = vunpack.c.h.b16 %v92
    %v645 = vunpack.c.l.b16 %v93
    %v646 = vunpack.c.h.b16 %v93
    %v647 = vunpack.c.l.b16 %v94
    %v648 = vunpack.c.h.b16 %v94
    %v649 = vunpack.c.l.b16 %v95
    %v650 = vunpack.c.h.b16 %v95
    %v651 = vunpack.c.l.b16 %v96
    %v652 = vunpack.c.h.b16 %v96
    %v653 = vunpack.c.l.b16 %v97
    %v654 = vunpack.c.h.b16 %v97
    %v655 = vunpack.c.l.b16 %v98
    %v656 = vunpack.c.h.b16 %v98
    %v657 = vunpack.c.l.b16 %v99
    %v658 = vunpack.c.h.b16 %v99
    %v659 = vpack.c.b16 %v583, %v579
    %v660 = vpack.c.b16 %v584, %v580
    %v661 = vpack.c.b16 %v585, %v581
    %v662 = vpack.c.b16 %v586, %v582
    %v663 = vpack.c.b16 %v591, %v587
    %v664 = vpack.c.b16 %v592, %v588
    %v665 = vpack.c.b16 %v593, %v589
    %v666 = vpack.c.b16 %v594, %v590
    %v667 = vpack.c.b16 %v599, %v595
    %v668 = vpack.c.b16 %v600, %v596
    %v669 = vpack.c.b16 %v601, %v597
    %v670 = vpack.c.b16 %v602, %v598
    %v671 = vpack.c.b16 %v607, %v603
    %v672 = vpack.c.b16 %v608, %v604
    %v673 = vpack.c.b16 %v609, %v605
    %v674 = vpack.c.b16 %v610, %v606
    %v675 = vpack.c.b16 %v615, %v611
    %v676 = vpack.c.b16 %v616, %v612
    %v677 = vpack.c.b16 %v617, %v613
    %v678 = vpack.c.b16 %v618, %v614
    %v679 = vpack.c.b16 %v623, %v619
    %v680 = vpack.c.b16 %v624, %v620
    %v681 = vpack.c.b16 %v625, %v621
    %v682 = vpack.c.b16 %v626, %v622
    %v683 = vpack.c.b16 %v631, %v627
    %v684 = vpack.c.b16 %v632, %v628
    %v685 = vpack.c.b16 %v633, %v629
    %v686 = vpack.c.b16 %v634, %v630
    %v687 = vpack.c.b16 %v639, %v635
    %v688 = vpack.c.b16 %v640, %v636
    %v689 = vpack.c.b16 %v641, %v637
    %v690 = vpack.c.b16 %v642, %v638
    %v691 = vpack.c.b16 %v647, %v643
    %v692 = vpack.c.b16 %v648, %v644
    %v693 = vpack.c.b16 %v649, %v645
    %v694 = vpack.c.b16 %v650, %v646
    %v695 = vpack.c.b16 %v655, %v651
    %v696 = vpack.c.b16 %v656, %v652
    %v697 = vpack.c.b16 %v657, %v653
    %v698 = vpack.c.b16 %v658, %v654
    %v740 = vsel %vm408, %v534, 0
    %v743 = vsel %vm408, %v536, 0
    %745 = vmatprep.subr.bf16.mxu0 %v660
    %746 = vmatpush1.bf16.msra.mxu0 %v659
    %747 = vmatprep.subr.bf16.mxu0 %v664
    %748 = vmatpush1.bf16.msra.mxu0 %v663
    %749 = vmatprep.subr.bf16.mxu0 %v668
    %750 = vmatpush1.bf16.msra.mxu0 %v667
    %751 = vmatprep.subr.bf16.mxu0 %v672
    %752 = vmatpush1.bf16.msra.mxu0 %v671
    %753 = vmatprep.subr.bf16.mxu0 %v676
    %754 = vmatpush1.bf16.msra.mxu0 %v675
    %755 = vmatprep.subr.bf16.mxu0 %v680
    %756 = vmatpush1.bf16.msra.mxu0 %v679
    %757 = vmatprep.subr.bf16.mxu0 %v684
    %758 = vmatpush1.bf16.msra.mxu0 %v683
    %759 = vmatprep.subr.bf16.mxu0 %v688
    %760 = vmatpush1.bf16.msra.mxu0 %v687
    %761 = vmatprep.subr.bf16.mxu0 %v692
    %762 = vmatpush1.bf16.msra.mxu0 %v691
    %763 = vmatprep.subr.bf16.mxu0 %v696
    %764 = vmatpush1.bf16.msra.mxu0 %v695
    %765 = vmatprep.subr.bf16.mxu0 0
    %766 = vmatpush1.bf16.msra.mxu0 0
    %767 = vmatprep.subr.bf16.mxu0 0
    %768 = vmatpush1.bf16.msra.mxu0 0
    %769 = vmatprep.subr.bf16.mxu0 0
    %770 = vmatpush1.bf16.msra.mxu0 0
    %771 = vmatprep.subr.bf16.mxu0 0
    %772 = vmatpush1.bf16.msra.mxu0 0
    %773 = vmatprep.subr.bf16.mxu0 0
    %774 = vmatpush1.bf16.msra.mxu0 0
    %775 = vmatprep.subr.bf16.mxu0 0
    %776 = vmatpush1.bf16.msra.mxu0 0
    %777 = vmatprep.mubr.bf16.mxu0 %v740
    %778 = vmatmul.mubr.bf16.gmra.mrb[0].mxu0 %v533
    %v779 = vpop.f32.mrb[0].mxu0
    %v780 = vadd.f32 %v450, %v779
    %v781 = vpop.f32.mrb[0].mxu0
    %v782 = vadd.f32 %v452, %v781
    %v783 = vpop.f32.mrb[0].mxu0
    %v784 = vadd.f32 %v454, %v783
    %v785 = vpop.f32.mrb[0].mxu0
    %v786 = vadd.f32 %v456, %v785
    %787 = vmatprep.mubr.bf16.mxu0 %v743
    %788 = vmatmul.mubr.bf16.gmra.mrb[0].mxu0 %v535
    %v789 = vpop.f32.mrb[0].mxu0
    %v790 = vadd.f32 %v460, %v789
    %v791 = vpop.f32.mrb[0].mxu0
    %v792 = vadd.f32 %v462, %v791
    %v793 = vpop.f32.mrb[0].mxu0
    %v794 = vadd.f32 %v464, %v793
    %v795 = vpop.f32.mrb[0].mxu0
    %v796 = vadd.f32 %v466, %v795
    %797 = vdwg.mxu0
    %798 = vmatprep.subr.bf16.mxu0 %v662
    %799 = vmatpush1.bf16.msra.mxu0 %v661
    %800 = vmatprep.subr.bf16.mxu0 %v666
    %801 = vmatpush1.bf16.msra.mxu0 %v665
    %802 = vmatprep.subr.bf16.mxu0 %v670
    %803 = vmatpush1.bf16.msra.mxu0 %v669
    %804 = vmatprep.subr.bf16.mxu0 %v674
    %805 = vmatpush1.bf16.msra.mxu0 %v673
    %806 = vmatprep.subr.bf16.mxu0 %v678
    %807 = vmatpush1.bf16.msra.mxu0 %v677
    %808 = vmatprep.subr.bf16.mxu0 %v682
    %809 = vmatpush1.bf16.msra.mxu0 %v681
    %810 = vmatprep.subr.bf16.mxu0 %v686
    %811 = vmatpush1.bf16.msra.mxu0 %v685
    %812 = vmatprep.subr.bf16.mxu0 %v690
    %813 = vmatpush1.bf16.msra.mxu0 %v689
    %814 = vmatprep.subr.bf16.mxu0 %v694
    %815 = vmatpush1.bf16.msra.mxu0 %v693
    %816 = vmatprep.subr.bf16.mxu0 %v698
    %817 = vmatpush1.bf16.msra.mxu0 %v697
    %818 = vmatprep.subr.bf16.mxu0 0
    %819 = vmatpush1.bf16.msra.mxu0 0
    %820 = vmatprep.subr.bf16.mxu0 0
    %821 = vmatpush1.bf16.msra.mxu0 0
    %822 = vmatprep.subr.bf16.mxu0 0
    %823 = vmatpush1.bf16.msra.mxu0 0
    %824 = vmatprep.subr.bf16.mxu0 0
    %825 = vmatpush1.bf16.msra.mxu0 0
    %826 = vmatprep.subr.bf16.mxu0 0
    %827 = vmatpush1.bf16.msra.mxu0 0
    %828 = vmatprep.subr.bf16.mxu0 0
    %829 = vmatpush1.bf16.msra.mxu0 0
    %830 = vmatprep.mubr.bf16.mxu0 %v740
    %831 = vmatmul.mubr.bf16.gmra.mrb[0].mxu0 %v533
    %v832 = vpop.f32.mrb[0].mxu0
    %v833 = vadd.f32 %v503, %v832
    %v834 = vpop.f32.mrb[0].mxu0
    %v835 = vadd.f32 %v505, %v834
    %v836 = vpop.f32.mrb[0].mxu0
    %v837 = vadd.f32 %v507, %v836
    %v838 = vpop.f32.mrb[0].mxu0
    %v839 = vadd.f32 %v509, %v838
    %840 = vmatprep.mubr.bf16.mxu0 %v743
    %841 = vmatmul.mubr.bf16.gmra.mrb[0].mxu0 %v535
    %v842 = vpop.f32.mrb[0].mxu0
    %v843 = vadd.f32 %v513, %v842
    %v844 = vpop.f32.mrb[0].mxu0
    %v845 = vadd.f32 %v515, %v844
    %v846 = vpop.f32.mrb[0].mxu0
    %v847 = vadd.f32 %v517, %v846
    %v848 = vpop.f32.mrb[0].mxu0
    %v849 = vadd.f32 %v519, %v848
    %850 = vdwg.mxu0
    %v851 = vld [vmem:[#allocation2] sm:$0xee]
    %v852 = vld [vmem:[#allocation2 + $0x18] sm:$0xee]
    %vm857 = vcmask 1042432
    %vm858 = vcmask 1046532
    %vm859 = vmor %vm857, %vm858
    %v860 = vrot.slane %v851, 5
    %v861 = vrot.slane %v860, 4
    %v862 = vrot.slane %v57, 5
    %v863 = vsel %vm859, %v861, %v862
    %v864 = vrot.slane %v862, 4
    %v865 = vrot.slane %v100, 5
    %v866 = vsel %vm859, %v864, %v865
    %v867 = vrot.slane %v852, 5
    %v868 = vrot.slane %v867, 4
    %v869 = vrot.slane %v59, 5
    %v870 = vsel %vm859, %v868, %v869
    %v871 = vrot.slane %v869, 4
    %v872 = vrot.slane %v101, 5
    %v873 = vsel %vm859, %v871, %v872
    %s874 = scalar_lea.vmem [#allocation4], 640
    %v875 = vld [vmem:[%s874] sm:$0xff]
    %v876 = vld [vmem:[%s874 + $0x8] sm:$0xff]
    %v877 = vld [vmem:[%s874 + $0x10] sm:$0xff]
    %v878 = vld [vmem:[%s874 + $0x18] sm:$0xff]
    %v879 = vld [vmem:[%s874 + $0x20] sm:$0xff]
    %v880 = vld [vmem:[%s874 + $0x28] sm:$0xff]
    %v881 = vld [vmem:[%s874 + $0x30] sm:$0xff]
    %v882 = vld [vmem:[%s874 + $0x38] sm:$0xff]
    %v883 = vld [vmem:[%s874 + $0x40] sm:$0xff]
    %v884 = vld [vmem:[%s874 + $0x48] sm:$0xff]
    %v885 = vld [vmem:[%s874 + $0x50] sm:$0xff]
    %v886 = vld [vmem:[%s874 + $0x58] sm:$0xff]
    %v887 = vld [vmem:[%s874 + $0x60] sm:$0xff]
    %v888 = vld [vmem:[%s874 + $0x68] sm:$0xff]
    %v889 = vld [vmem:[%s874 + $0x70] sm:$0xff]
    %v890 = vld [vmem:[%s874 + $0x78] sm:$0xff]
    %v891 = vld [vmem:[%s874 + $0x80] sm:$0xff]
    %v892 = vld [vmem:[%s874 + $0x88] sm:$0xff]
    %v893 = vld [vmem:[%s874 + $0x90] sm:$0xff]
    %v894 = vld [vmem:[%s874 + $0x98] sm:$0xff]
    %v895 = vld [vmem:[%s874 + $0xa0] sm:$0xff]
    %v896 = vld [vmem:[%s874 + $0xa8] sm:$0xff]
    %v897 = vld [vmem:[%s874 + $0xb0] sm:$0xff]
    %v898 = vld [vmem:[%s874 + $0xb8] sm:$0xff]
    %v899 = vld [vmem:[%s874 + $0xc0] sm:$0xff]
    %v900 = vld [vmem:[%s874 + $0xc8] sm:$0xff]
    %v901 = vld [vmem:[%s874 + $0xd0] sm:$0xff]
    %v902 = vld [vmem:[%s874 + $0xd8] sm:$0xff]
    %v903 = vld [vmem:[%s874 + $0xe0] sm:$0xff]
    %v904 = vld [vmem:[%s874 + $0xe8] sm:$0xff]
    %v905 = vld [vmem:[%s874 + $0xf0] sm:$0xff]
    %v906 = vld [vmem:[%s874 + $0xf8] sm:$0xff]
    %v907 = vld [vmem:[%s874 + $0x100] sm:$0xff]
    %v908 = vld [vmem:[%s874 + $0x108] sm:$0xff]
    %v909 = vld [vmem:[%s874 + $0x110] sm:$0xff]
    %v910 = vld [vmem:[%s874 + $0x118] sm:$0xff]
    %v911 = vld [vmem:[%s874 + $0x120] sm:$0xff]
    %v912 = vld [vmem:[%s874 + $0x128] sm:$0xff]
    %v913 = vld [vmem:[%s874 + $0x130] sm:$0xff]
    %v914 = vld [vmem:[%s874 + $0x138] sm:$0xff]
    %v915 = vunpack.c.l.b16 %v863
    %v916 = vunpack.c.h.b16 %v863
    %v917 = vunpack.c.l.b16 %v866
    %v918 = vunpack.c.h.b16 %v866
    %v919 = vunpack.c.l.b16 %v870
    %v920 = vunpack.c.h.b16 %v870
    %v921 = vunpack.c.l.b16 %v873
    %v922 = vunpack.c.h.b16 %v873
    %v923 = vpack.c.b16 %v917, %v915
    %v924 = vpack.c.b16 %v918, %v916
    %v925 = vpack.c.b16 %v921, %v919
    %v926 = vpack.c.b16 %v922, %v920
    %v969 = vunpack.c.l.b16 %v875
    %v970 = vunpack.c.h.b16 %v875
    %v971 = vunpack.c.l.b16 %v876
    %v972 = vunpack.c.h.b16 %v876
    %v973 = vunpack.c.l.b16 %v877
    %v974 = vunpack.c.h.b16 %v877
    %v975 = vunpack.c.l.b16 %v878
    %v976 = vunpack.c.h.b16 %v878
    %v977 = vunpack.c.l.b16 %v879
    %v978 = vunpack.c.h.b16 %v879
    %v979 = vunpack.c.l.b16 %v880
    %v980 = vunpack.c.h.b16 %v880
    %v981 = vunpack.c.l.b16 %v881
    %v982 = vunpack.c.h.b16 %v881
    %v983 = vunpack.c.l.b16 %v882
    %v984 = vunpack.c.h.b16 %v882
    %v985 = vunpack.c.l.b16 %v883
    %v986 = vunpack.c.h.b16 %v883
    %v987 = vunpack.c.l.b16 %v884
    %v988 = vunpack.c.h.b16 %v884
    %v989 = vunpack.c.l.b16 %v885
    %v990 = vunpack.c.h.b16 %v885
    %v991 = vunpack.c.l.b16 %v886
    %v992 = vunpack.c.h.b16 %v886
    %v993 = vunpack.c.l.b16 %v887
    %v994 = vunpack.c.h.b16 %v887
    %v995 = vunpack.c.l.b16 %v888
    %v996 = vunpack.c.h.b16 %v888
    %v997 = vunpack.c.l.b16 %v889
    %v998 = vunpack.c.h.b16 %v889
    %v999 = vunpack.c.l.b16 %v890
    %v1000 = vunpack.c.h.b16 %v890
    %v1001 = vunpack.c.l.b16 %v891
    %v1002 = vunpack.c.h.b16 %v891
    %v1003 = vunpack.c.l.b16 %v892
    %v1004 = vunpack.c.h.b16 %v892
    %v1005 = vunpack.c.l.b16 %v893
    %v1006 = vunpack.c.h.b16 %v893
    %v1007 = vunpack.c.l.b16 %v894
    %v1008 = vunpack.c.h.b16 %v894
    %v1009 = vunpack.c.l.b16 %v895
    %v1010 = vunpack.c.h.b16 %v895
    %v1011 = vunpack.c.l.b16 %v896
    %v1012 = vunpack.c.h.b16 %v896
    %v1013 = vunpack.c.l.b16 %v897
    %v1014 = vunpack.c.h.b16 %v897
    %v1015 = vunpack.c.l.b16 %v898
    %v1016 = vunpack.c.h.b16 %v898
    %v1017 = vunpack.c.l.b16 %v899
    %v1018 = vunpack.c.h.b16 %v899
    %v1019 = vunpack.c.l.b16 %v900
    %v1020 = vunpack.c.h.b16 %v900
    %v1021 = vunpack.c.l.b16 %v901
    %v1022 = vunpack.c.h.b16 %v901
    %v1023 = vunpack.c.l.b16 %v902
    %v1024 = vunpack.c.h.b16 %v902
    %v1025 = vunpack.c.l.b16 %v903
    %v1026 = vunpack.c.h.b16 %v903
    %v1027 = vunpack.c.l.b16 %v904
    %v1028 = vunpack.c.h.b16 %v904
    %v1029 = vunpack.c.l.b16 %v905
    %v1030 = vunpack.c.h.b16 %v905
    %v1031 = vunpack.c.l.b16 %v906
    %v1032 = vunpack.c.h.b16 %v906
    %v1033 = vunpack.c.l.b16 %v907
    %v1034 = vunpack.c.h.b16 %v907
    %v1035 = vunpack.c.l.b16 %v908
    %v1036 = vunpack.c.h.b16 %v908
    %v1037 = vunpack.c.l.b16 %v909
    %v1038 = vunpack.c.h.b16 %v909
    %v1039 = vunpack.c.l.b16 %v910
    %v1040 = vunpack.c.h.b16 %v910
    %v1041 = vunpack.c.l.b16 %v911
    %v1042 = vunpack.c.h.b16 %v911
    %v1043 = vunpack.c.l.b16 %v912
    %v1044 = vunpack.c.h.b16 %v912
    %v1045 = vunpack.c.l.b16 %v913
    %v1046 = vunpack.c.h.b16 %v913
    %v1047 = vunpack.c.l.b16 %v914
    %v1048 = vunpack.c.h.b16 %v914
    %v1049 = vpack.c.b16 %v973, %v969
    %v1050 = vpack.c.b16 %v974, %v970
    %v1051 = vpack.c.b16 %v975, %v971
    %v1052 = vpack.c.b16 %v976, %v972
    %v1053 = vpack.c.b16 %v981, %v977
    %v1054 = vpack.c.b16 %v982, %v978
    %v1055 = vpack.c.b16 %v983, %v979
    %v1056 = vpack.c.b16 %v984, %v980
    %v1057 = vpack.c.b16 %v989, %v985
    %v1058 = vpack.c.b16 %v990, %v986
    %v1059 = vpack.c.b16 %v991, %v987
    %v1060 = vpack.c.b16 %v992, %v988
    %v1061 = vpack.c.b16 %v997, %v993
    %v1062 = vpack.c.b16 %v998, %v994
    %v1063 = vpack.c.b16 %v999, %v995
    %v1064 = vpack.c.b16 %v1000, %v996
    %v1065 = vpack.c.b16 %v1005, %v1001
    %v1066 = vpack.c.b16 %v1006, %v1002
    %v1067 = vpack.c.b16 %v1007, %v1003
    %v1068 = vpack.c.b16 %v1008, %v1004
    %v1069 = vpack.c.b16 %v1013, %v1009
    %v1070 = vpack.c.b16 %v1014, %v1010
    %v1071 = vpack.c.b16 %v1015, %v1011
    %v1072 = vpack.c.b16 %v1016, %v1012
    %v1073 = vpack.c.b16 %v1021, %v1017
    %v1074 = vpack.c.b16 %v1022, %v1018
    %v1075 = vpack.c.b16 %v1023, %v1019
    %v1076 = vpack.c.b16 %v1024, %v1020
    %v1077 = vpack.c.b16 %v1029, %v1025
    %v1078 = vpack.c.b16 %v1030, %v1026
    %v1079 = vpack.c.b16 %v1031, %v1027
    %v1080 = vpack.c.b16 %v1032, %v1028
    %v1081 = vpack.c.b16 %v1037, %v1033
    %v1082 = vpack.c.b16 %v1038, %v1034
    %v1083 = vpack.c.b16 %v1039, %v1035
    %v1084 = vpack.c.b16 %v1040, %v1036
    %v1085 = vpack.c.b16 %v1045, %v1041
    %v1086 = vpack.c.b16 %v1046, %v1042
    %v1087 = vpack.c.b16 %v1047, %v1043
    %v1088 = vpack.c.b16 %v1048, %v1044
    %v1130 = vsel %vm408, %v924, 0
    %v1133 = vsel %vm408, %v926, 0
    %1135 = vmatprep.subr.bf16.mxu0 %v1050
    %1136 = vmatpush1.bf16.msra.mxu0 %v1049
    %1137 = vmatprep.subr.bf16.mxu0 %v1054
    %1138 = vmatpush1.bf16.msra.mxu0 %v1053
    %1139 = vmatprep.subr.bf16.mxu0 %v1058
    %1140 = vmatpush1.bf16.msra.mxu0 %v1057
    %1141 = vmatprep.subr.bf16.mxu0 %v1062
    %1142 = vmatpush1.bf16.msra.mxu0 %v1061
    %1143 = vmatprep.subr.bf16.mxu0 %v1066
    %1144 = vmatpush1.bf16.msra.mxu0 %v1065
    %1145 = vmatprep.subr.bf16.mxu0 %v1070
    %1146 = vmatpush1.bf16.msra.mxu0 %v1069
    %1147 = vmatprep.subr.bf16.mxu0 %v1074
    %1148 = vmatpush1.bf16.msra.mxu0 %v1073
    %1149 = vmatprep.subr.bf16.mxu0 %v1078
    %1150 = vmatpush1.bf16.msra.mxu0 %v1077
    %1151 = vmatprep.subr.bf16.mxu0 %v1082
    %1152 = vmatpush1.bf16.msra.mxu0 %v1081
    %1153 = vmatprep.subr.bf16.mxu0 %v1086
    %1154 = vmatpush1.bf16.msra.mxu0 %v1085
    %1155 = vmatprep.subr.bf16.mxu0 0
    %1156 = vmatpush1.bf16.msra.mxu0 0
    %1157 = vmatprep.subr.bf16.mxu0 0
    %1158 = vmatpush1.bf16.msra.mxu0 0
    %1159 = vmatprep.subr.bf16.mxu0 0
    %1160 = vmatpush1.bf16.msra.mxu0 0
    %1161 = vmatprep.subr.bf16.mxu0 0
    %1162 = vmatpush1.bf16.msra.mxu0 0
    %1163 = vmatprep.subr.bf16.mxu0 0
    %1164 = vmatpush1.bf16.msra.mxu0 0
    %1165 = vmatprep.subr.bf16.mxu0 0
    %1166 = vmatpush1.bf16.msra.mxu0 0
    %1167 = vmatprep.mubr.bf16.mxu0 %v1130
    %1168 = vmatmul.mubr.bf16.gmra.mrb[0].mxu0 %v923
    %v1169 = vpop.f32.mrb[0].mxu0
    %v1170 = vadd.f32 0.0, %v1169
    %v1171 = vpop.f32.mrb[0].mxu0
    %v1172 = vadd.f32 0.0, %v1171
    %v1173 = vpop.f32.mrb[0].mxu0
    %v1174 = vadd.f32 0.0, %v1173
    %v1175 = vpop.f32.mrb[0].mxu0
    %v1176 = vadd.f32 0.0, %v1175
    %1177 = vmatprep.mubr.bf16.mxu0 %v1133
    %1178 = vmatmul.mubr.bf16.gmra.mrb[0].mxu0 %v925
    %v1179 = vpop.f32.mrb[0].mxu0
    %v1180 = vadd.f32 0.0, %v1179
    %v1181 = vpop.f32.mrb[0].mxu0
    %v1182 = vadd.f32 0.0, %v1181
    %v1183 = vpop.f32.mrb[0].mxu0
    %v1184 = vadd.f32 0.0, %v1183
    %v1185 = vpop.f32.mrb[0].mxu0
    %v1186 = vadd.f32 0.0, %v1185
    %1187 = vdwg.mxu0
    %1188 = vmatprep.subr.bf16.mxu0 %v1052
    %1189 = vmatpush1.bf16.msra.mxu0 %v1051
    %1190 = vmatprep.subr.bf16.mxu0 %v1056
    %1191 = vmatpush1.bf16.msra.mxu0 %v1055
    %1192 = vmatprep.subr.bf16.mxu0 %v1060
    %1193 = vmatpush1.bf16.msra.mxu0 %v1059
    %1194 = vmatprep.subr.bf16.mxu0 %v1064
    %1195 = vmatpush1.bf16.msra.mxu0 %v1063
    %1196 = vmatprep.subr.bf16.mxu0 %v1068
    %1197 = vmatpush1.bf16.msra.mxu0 %v1067
    %1198 = vmatprep.subr.bf16.mxu0 %v1072
    %1199 = vmatpush1.bf16.msra.mxu0 %v1071
    %1200 = vmatprep.subr.bf16.mxu0 %v1076
    %1201 = vmatpush1.bf16.msra.mxu0 %v1075
    %1202 = vmatprep.subr.bf16.mxu0 %v1080
    %1203 = vmatpush1.bf16.msra.mxu0 %v1079
    %1204 = vmatprep.subr.bf16.mxu0 %v1084
    %1205 = vmatpush1.bf16.msra.mxu0 %v1083
    %1206 = vmatprep.subr.bf16.mxu0 %v1088
    %1207 = vmatpush1.bf16.msra.mxu0 %v1087
    %1208 = vmatprep.subr.bf16.mxu0 0
    %1209 = vmatpush1.bf16.msra.mxu0 0
    %1210 = vmatprep.subr.bf16.mxu0 0
    %1211 = vmatpush1.bf16.msra.mxu0 0
    %1212 = vmatprep.subr.bf16.mxu0 0
    %1213 = vmatpush1.bf16.msra.mxu0 0
    %1214 = vmatprep.subr.bf16.mxu0 0
    %1215 = vmatpush1.bf16.msra.mxu0 0
    %1216 = vmatprep.subr.bf16.mxu0 0
    %1217 = vmatpush1.bf16.msra.mxu0 0
    %1218 = vmatprep.subr.bf16.mxu0 0
    %1219 = vmatpush1.bf16.msra.mxu0 0
    %1220 = vmatprep.mubr.bf16.mxu0 %v1130
    %1221 = vmatmul.mubr.bf16.gmra.mrb[0].mxu0 %v923
    %v1222 = vpop.f32.mrb[0].mxu0
    %v1223 = vadd.f32 0.0, %v1222
    %v1224 = vpop.f32.mrb[0].mxu0
    %v1225 = vadd.f32 0.0, %v1224
    %v1226 = vpop.f32.mrb[0].mxu0
    %v1227 = vadd.f32 0.0, %v1226
    %v1228 = vpop.f32.mrb[0].mxu0
    %v1229 = vadd.f32 0.0, %v1228
    %1230 = vmatprep.mubr.bf16.mxu0 %v1133
    %1231 = vmatmul.mubr.bf16.gmra.mrb[0].mxu0 %v925
    %v1232 = vpop.f32.mrb[0].mxu0
    %v1233 = vadd.f32 0.0, %v1232
    %v1234 = vpop.f32.mrb[0].mxu0
    %v1235 = vadd.f32 0.0, %v1234
    %v1236 = vpop.f32.mrb[0].mxu0
    %v1237 = vadd.f32 0.0, %v1236
    %v1238 = vpop.f32.mrb[0].mxu0
    %v1239 = vadd.f32 0.0, %v1238
    %1240 = vdwg.mxu0
    %v1241 = vadd.f32 %v780, %v1170
    %v1242 = vadd.f32 %v782, %v1172
    %v1243 = vadd.f32 %v833, %v1223
    %v1244 = vadd.f32 %v835, %v1225
    %v1245 = vadd.f32 %v784, %v1174
    %v1246 = vadd.f32 %v786, %v1176
    %v1247 = vadd.f32 %v837, %v1227
    %v1248 = vadd.f32 %v839, %v1229
    %v1249 = vadd.f32 %v790, %v1180
    %v1250 = vadd.f32 %v792, %v1182
    %v1251 = vadd.f32 %v843, %v1233
    %v1252 = vadd.f32 %v845, %v1235
    %v1253 = vadd.f32 %v794, %v1184
    %v1254 = vadd.f32 %v796, %v1186
    %v1255 = vadd.f32 %v847, %v1237
    %v1256 = vadd.f32 %v849, %v1239
    %v1257 = vld [vmem:[#allocation2 + $0x10] sm:$0x33]
    %v1258 = vld [vmem:[#allocation2 + $0x28] sm:$0x33]
    %vm1259 = vsmask.f32 2304
    %vm1260 = vsmask.f32 6416
    %vm1261 = vmor %vm1259, %vm1260
    %v1263 = vshrl.u32 %v851, 16
    %v1265 = vrot.slane %v1263, 5
    %v1266 = vshll.u32 %v851, 16
    %v1268 = vrot.slane %v1266, 6
    %v1269 = vor.u32 %v1265, %v1268
    %v1270 = vrot.slane %v1269, 4
    %v1271 = vrot.slane %v119, 5
    %v1272 = vrot.slane %v115, 6
    %v1273 = vor.u32 %v1271, %v1272
    %v1274 = vsel %vm1261, %v1270, %v1273
    %v1275 = vrot.slane %v1273, 4
    %v1277 = vshrl.u32 %v1257, 16
    %v1279 = vrot.slane %v1277, 5
    %v1280 = vshll.u32 %v1257, 16
    %v1282 = vrot.slane %v1280, 6
    %v1283 = vor.u32 %v1279, %v1282
    %v1284 = vsel %vm1261, %v1275, %v1283
    %v1286 = vshrl.u32 %v852, 16
    %v1288 = vrot.slane %v1286, 5
    %v1289 = vshll.u32 %v852, 16
    %v1291 = vrot.slane %v1289, 6
    %v1292 = vor.u32 %v1288, %v1291
    %v1293 = vrot.slane %v1292, 4
    %v1294 = vrot.slane %v143, 5
    %v1295 = vrot.slane %v139, 6
    %v1296 = vor.u32 %v1294, %v1295
    %v1297 = vsel %vm1261, %v1293, %v1296
    %v1298 = vrot.slane %v1296, 4
    %v1300 = vshrl.u32 %v1258, 16
    %v1302 = vrot.slane %v1300, 5
    %v1303 = vshll.u32 %v1258, 16
    %v1305 = vrot.slane %v1303, 6
    %v1306 = vor.u32 %v1302, %v1305
    %v1307 = vsel %vm1261, %v1298, %v1306
    %s1308 = scalar_lea.vmem [#allocation4], 960
    %v1309 = vld [vmem:[%s1308] sm:$0xff]
    %v1310 = vld [vmem:[%s1308 + $0x8] sm:$0xff]
    %v1311 = vld [vmem:[%s1308 + $0x10] sm:$0xff]
    %v1312 = vld [vmem:[%s1308 + $0x18] sm:$0xff]
    %v1313 = vld [vmem:[%s1308 + $0x20] sm:$0xff]
    %v1314 = vld [vmem:[%s1308 + $0x28] sm:$0xff]
    %v1315 = vld [vmem:[%s1308 + $0x30] sm:$0xff]
    %v1316 = vld [vmem:[%s1308 + $0x38] sm:$0xff]
    %v1317 = vld [vmem:[%s1308 + $0x40] sm:$0xff]
    %v1318 = vld [vmem:[%s1308 + $0x48] sm:$0xff]
    %v1319 = vld [vmem:[%s1308 + $0x50] sm:$0xff]
    %v1320 = vld [vmem:[%s1308 + $0x58] sm:$0xff]
    %v1321 = vld [vmem:[%s1308 + $0x60] sm:$0xff]
    %v1322 = vld [vmem:[%s1308 + $0x68] sm:$0xff]
    %v1323 = vld [vmem:[%s1308 + $0x70] sm:$0xff]
    %v1324 = vld [vmem:[%s1308 + $0x78] sm:$0xff]
    %v1325 = vld [vmem:[%s1308 + $0x80] sm:$0xff]
    %v1326 = vld [vmem:[%s1308 + $0x88] sm:$0xff]
    %v1327 = vld [vmem:[%s1308 + $0x90] sm:$0xff]
    %v1328 = vld [vmem:[%s1308 + $0x98] sm:$0xff]
    %v1329 = vld [vmem:[%s1308 + $0xa0] sm:$0xff]
    %v1330 = vld [vmem:[%s1308 + $0xa8] sm:$0xff]
    %v1331 = vld [vmem:[%s1308 + $0xb0] sm:$0xff]
    %v1332 = vld [vmem:[%s1308 + $0xb8] sm:$0xff]
    %v1333 = vld [vmem:[%s1308 + $0xc0] sm:$0xff]
    %v1334 = vld [vmem:[%s1308 + $0xc8] sm:$0xff]
    %v1335 = vld [vmem:[%s1308 + $0xd0] sm:$0xff]
    %v1336 = vld [vmem:[%s1308 + $0xd8] sm:$0xff]
    %v1337 = vld [vmem:[%s1308 + $0xe0] sm:$0xff]
    %v1338 = vld [vmem:[%s1308 + $0xe8] sm:$0xff]
    %v1339 = vld [vmem:[%s1308 + $0xf0] sm:$0xff]
    %v1340 = vld [vmem:[%s1308 + $0xf8] sm:$0xff]
    %v1341 = vld [vmem:[%s1308 + $0x100] sm:$0xff]
    %v1342 = vld [vmem:[%s1308 + $0x108] sm:$0xff]
    %v1343 = vld [vmem:[%s1308 + $0x110] sm:$0xff]
    %v1344 = vld [vmem:[%s1308 + $0x118] sm:$0xff]
    %v1345 = vld [vmem:[%s1308 + $0x120] sm:$0xff]
    %v1346 = vld [vmem:[%s1308 + $0x128] sm:$0xff]
    %v1347 = vld [vmem:[%s1308 + $0x130] sm:$0xff]
    %v1348 = vld [vmem:[%s1308 + $0x138] sm:$0xff]
    %v1349 = vunpack.c.l.b16 %v1274
    %v1350 = vunpack.c.h.b16 %v1274
    %v1351 = vunpack.c.l.b16 %v1284
    %v1352 = vunpack.c.h.b16 %v1284
    %v1353 = vunpack.c.l.b16 %v1297
    %v1354 = vunpack.c.h.b16 %v1297
    %v1355 = vunpack.c.l.b16 %v1307
    %v1356 = vunpack.c.h.b16 %v1307
    %v1357 = vpack.c.b16 %v1351, %v1349
    %v1358 = vpack.c.b16 %v1352, %v1350
    %v1359 = vpack.c.b16 %v1355, %v1353
    %v1360 = vpack.c.b16 %v1356, %v1354
    %v1403 = vunpack.c.l.b16 %v1309
    %v1404 = vunpack.c.h.b16 %v1309
    %v1405 = vunpack.c.l.b16 %v1310
    %v1406 = vunpack.c.h.b16 %v1310
    %v1407 = vunpack.c.l.b16 %v1311
    %v1408 = vunpack.c.h.b16 %v1311
    %v1409 = vunpack.c.l.b16 %v1312
    %v1410 = vunpack.c.h.b16 %v1312
    %v1411 = vunpack.c.l.b16 %v1313
    %v1412 = vunpack.c.h.b16 %v1313
    %v1413 = vunpack.c.l.b16 %v1314
    %v1414 = vunpack.c.h.b16 %v1314
    %v1415 = vunpack.c.l.b16 %v1315
    %v1416 = vunpack.c.h.b16 %v1315
    %v1417 = vunpack.c.l.b16 %v1316
    %v1418 = vunpack.c.h.b16 %v1316
    %v1419 = vunpack.c.l.b16 %v1317
    %v1420 = vunpack.c.h.b16 %v1317
    %v1421 = vunpack.c.l.b16 %v1318
    %v1422 = vunpack.c.h.b16 %v1318
    %v1423 = vunpack.c.l.b16 %v1319
    %v1424 = vunpack.c.h.b16 %v1319
    %v1425 = vunpack.c.l.b16 %v1320
    %v1426 = vunpack.c.h.b16 %v1320
    %v1427 = vunpack.c.l.b16 %v1321
    %v1428 = vunpack.c.h.b16 %v1321
    %v1429 = vunpack.c.l.b16 %v1322
    %v1430 = vunpack.c.h.b16 %v1322
    %v1431 = vunpack.c.l.b16 %v1323
    %v1432 = vunpack.c.h.b16 %v1323
    %v1433 = vunpack.c.l.b16 %v1324
    %v1434 = vunpack.c.h.b16 %v1324
    %v1435 = vunpack.c.l.b16 %v1325
    %v1436 = vunpack.c.h.b16 %v1325
    %v1437 = vunpack.c.l.b16 %v1326
    %v1438 = vunpack.c.h.b16 %v1326
    %v1439 = vunpack.c.l.b16 %v1327
    %v1440 = vunpack.c.h.b16 %v1327
    %v1441 = vunpack.c.l.b16 %v1328
    %v1442 = vunpack.c.h.b16 %v1328
    %v1443 = vunpack.c.l.b16 %v1329
    %v1444 = vunpack.c.h.b16 %v1329
    %v1445 = vunpack.c.l.b16 %v1330
    %v1446 = vunpack.c.h.b16 %v1330
    %v1447 = vunpack.c.l.b16 %v1331
    %v1448 = vunpack.c.h.b16 %v1331
    %v1449 = vunpack.c.l.b16 %v1332
    %v1450 = vunpack.c.h.b16 %v1332
    %v1451 = vunpack.c.l.b16 %v1333
    %v1452 = vunpack.c.h.b16 %v1333
    %v1453 = vunpack.c.l.b16 %v1334
    %v1454 = vunpack.c.h.b16 %v1334
    %v1455 = vunpack.c.l.b16 %v1335
    %v1456 = vunpack.c.h.b16 %v1335
    %v1457 = vunpack.c.l.b16 %v1336
    %v1458 = vunpack.c.h.b16 %v1336
    %v1459 = vunpack.c.l.b16 %v1337
    %v1460 = vunpack.c.h.b16 %v1337
    %v1461 = vunpack.c.l.b16 %v1338
    %v1462 = vunpack.c.h.b16 %v1338
    %v1463 = vunpack.c.l.b16 %v1339
    %v1464 = vunpack.c.h.b16 %v1339
    %v1465 = vunpack.c.l.b16 %v1340
    %v1466 = vunpack.c.h.b16 %v1340
    %v1467 = vunpack.c.l.b16 %v1341
    %v1468 = vunpack.c.h.b16 %v1341
    %v1469 = vunpack.c.l.b16 %v1342
    %v1470 = vunpack.c.h.b16 %v1342
    %v1471 = vunpack.c.l.b16 %v1343
    %v1472 = vunpack.c.h.b16 %v1343
    %v1473 = vunpack.c.l.b16 %v1344
    %v1474 = vunpack.c.h.b16 %v1344
    %v1475 = vunpack.c.l.b16 %v1345
    %v1476 = vunpack.c.h.b16 %v1345
    %v1477 = vunpack.c.l.b16 %v1346
    %v1478 = vunpack.c.h.b16 %v1346
    %v1479 = vunpack.c.l.b16 %v1347
    %v1480 = vunpack.c.h.b16 %v1347
    %v1481 = vunpack.c.l.b16 %v1348
    %v1482 = vunpack.c.h.b16 %v1348
    %v1483 = vpack.c.b16 %v1407, %v1403
    %v1484 = vpack.c.b16 %v1408, %v1404
    %v1485 = vpack.c.b16 %v1409, %v1405
    %v1486 = vpack.c.b16 %v1410, %v1406
    %v1487 = vpack.c.b16 %v1415, %v1411
    %v1488 = vpack.c.b16 %v1416, %v1412
    %v1489 = vpack.c.b16 %v1417, %v1413
    %v1490 = vpack.c.b16 %v1418, %v1414
    %v1491 = vpack.c.b16 %v1423, %v1419
    %v1492 = vpack.c.b16 %v1424, %v1420
    %v1493 = vpack.c.b16 %v1425, %v1421
    %v1494 = vpack.c.b16 %v1426, %v1422
    %v1495 = vpack.c.b16 %v1431, %v1427
    %v1496 = vpack.c.b16 %v1432, %v1428
    %v1497 = vpack.c.b16 %v1433, %v1429
    %v1498 = vpack.c.b16 %v1434, %v1430
    %v1499 = vpack.c.b16 %v1439, %v1435
    %v1500 = vpack.c.b16 %v1440, %v1436
    %v1501 = vpack.c.b16 %v1441, %v1437
    %v1502 = vpack.c.b16 %v1442, %v1438
    %v1503 = vpack.c.b16 %v1447, %v1443
    %v1504 = vpack.c.b16 %v1448, %v1444
    %v1505 = vpack.c.b16 %v1449, %v1445
    %v1506 = vpack.c.b16 %v1450, %v1446
    %v1507 = vpack.c.b16 %v1455, %v1451
    %v1508 = vpack.c.b16 %v1456, %v1452
    %v1509 = vpack.c.b16 %v1457, %v1453
    %v1510 = vpack.c.b16 %v1458, %v1454
    %v1511 = vpack.c.b16 %v1463, %v1459
    %v1512 = vpack.c.b16 %v1464, %v1460
    %v1513 = vpack.c.b16 %v1465, %v1461
    %v1514 = vpack.c.b16 %v1466, %v1462
    %v1515 = vpack.c.b16 %v1471, %v1467
    %v1516 = vpack.c.b16 %v1472, %v1468
    %v1517 = vpack.c.b16 %v1473, %v1469
    %v1518 = vpack.c.b16 %v1474, %v1470
    %v1519 = vpack.c.b16 %v1479, %v1475
    %v1520 = vpack.c.b16 %v1480, %v1476
    %v1521 = vpack.c.b16 %v1481, %v1477
    %v1522 = vpack.c.b16 %v1482, %v1478
    %v1564 = vsel %vm408, %v1358, 0
    %v1567 = vsel %vm408, %v1360, 0
    %1569 = vmatprep.subr.bf16.mxu0 %v1484
    %1570 = vmatpush1.bf16.msra.mxu0 %v1483
    %1571 = vmatprep.subr.bf16.mxu0 %v1488
    %1572 = vmatpush1.bf16.msra.mxu0 %v1487
    %1573 = vmatprep.subr.bf16.mxu0 %v1492
    %1574 = vmatpush1.bf16.msra.mxu0 %v1491
    %1575 = vmatprep.subr.bf16.mxu0 %v1496
    %1576 = vmatpush1.bf16.msra.mxu0 %v1495
    %1577 = vmatprep.subr.bf16.mxu0 %v1500
    %1578 = vmatpush1.bf16.msra.mxu0 %v1499
    %1579 = vmatprep.subr.bf16.mxu0 %v1504
    %1580 = vmatpush1.bf16.msra.mxu0 %v1503
    %1581 = vmatprep.subr.bf16.mxu0 %v1508
    %1582 = vmatpush1.bf16.msra.mxu0 %v1507
    %1583 = vmatprep.subr.bf16.mxu0 %v1512
    %1584 = vmatpush1.bf16.msra.mxu0 %v1511
    %1585 = vmatprep.subr.bf16.mxu0 %v1516
    %1586 = vmatpush1.bf16.msra.mxu0 %v1515
    %1587 = vmatprep.subr.bf16.mxu0 %v1520
    %1588 = vmatpush1.bf16.msra.mxu0 %v1519
    %1589 = vmatprep.subr.bf16.mxu0 0
    %1590 = vmatpush1.bf16.msra.mxu0 0
    %1591 = vmatprep.subr.bf16.mxu0 0
    %1592 = vmatpush1.bf16.msra.mxu0 0
    %1593 = vmatprep.subr.bf16.mxu0 0
    %1594 = vmatpush1.bf16.msra.mxu0 0
    %1595 = vmatprep.subr.bf16.mxu0 0
    %1596 = vmatpush1.bf16.msra.mxu0 0
    %1597 = vmatprep.subr.bf16.mxu0 0
    %1598 = vmatpush1.bf16.msra.mxu0 0
    %1599 = vmatprep.subr.bf16.mxu0 0
    %1600 = vmatpush1.bf16.msra.mxu0 0
    %1601 = vmatprep.mubr.bf16.mxu0 %v1564
    %1602 = vmatmul.mubr.bf16.gmra.mrb[0].mxu0 %v1357
    %v1603 = vpop.f32.mrb[0].mxu0
    %v1604 = vadd.f32 0.0, %v1603
    %v1605 = vpop.f32.mrb[0].mxu0
    %v1606 = vadd.f32 0.0, %v1605
    %v1607 = vpop.f32.mrb[0].mxu0
    %v1608 = vadd.f32 0.0, %v1607
    %v1609 = vpop.f32.mrb[0].mxu0
    %v1610 = vadd.f32 0.0, %v1609
    %1611 = vmatprep.mubr.bf16.mxu0 %v1567
    %1612 = vmatmul.mubr.bf16.gmra.mrb[0].mxu0 %v1359
    %v1613 = vpop.f32.mrb[0].mxu0
    %v1614 = vadd.f32 0.0, %v1613
    %v1615 = vpop.f32.mrb[0].mxu0
    %v1616 = vadd.f32 0.0, %v1615
    %v1617 = vpop.f32.mrb[0].mxu0
    %v1618 = vadd.f32 0.0, %v1617
    %v1619 = vpop.f32.mrb[0].mxu0
    %v1620 = vadd.f32 0.0, %v1619
    %1621 = vdwg.mxu0
    %1622 = vmatprep.subr.bf16.mxu0 %v1486
    %1623 = vmatpush1.bf16.msra.mxu0 %v1485
    %1624 = vmatprep.subr.bf16.mxu0 %v1490
    %1625 = vmatpush1.bf16.msra.mxu0 %v1489
    %1626 = vmatprep.subr.bf16.mxu0 %v1494
    %1627 = vmatpush1.bf16.msra.mxu0 %v1493
    %1628 = vmatprep.subr.bf16.mxu0 %v1498
    %1629 = vmatpush1.bf16.msra.mxu0 %v1497
    %1630 = vmatprep.subr.bf16.mxu0 %v1502
    %1631 = vmatpush1.bf16.msra.mxu0 %v1501
    %1632 = vmatprep.subr.bf16.mxu0 %v1506
    %1633 = vmatpush1.bf16.msra.mxu0 %v1505
    %1634 = vmatprep.subr.bf16.mxu0 %v1510
    %1635 = vmatpush1.bf16.msra.mxu0 %v1509
    %1636 = vmatprep.subr.bf16.mxu0 %v1514
    %1637 = vmatpush1.bf16.msra.mxu0 %v1513
    %1638 = vmatprep.subr.bf16.mxu0 %v1518
    %1639 = vmatpush1.bf16.msra.mxu0 %v1517
    %1640 = vmatprep.subr.bf16.mxu0 %v1522
    %1641 = vmatpush1.bf16.msra.mxu0 %v1521
    %1642 = vmatprep.subr.bf16.mxu0 0
    %1643 = vmatpush1.bf16.msra.mxu0 0
    %1644 = vmatprep.subr.bf16.mxu0 0
    %1645 = vmatpush1.bf16.msra.mxu0 0
    %1646 = vmatprep.subr.bf16.mxu0 0
    %1647 = vmatpush1.bf16.msra.mxu0 0
    %1648 = vmatprep.subr.bf16.mxu0 0
    %1649 = vmatpush1.bf16.msra.mxu0 0
    %1650 = vmatprep.subr.bf16.mxu0 0
    %1651 = vmatpush1.bf16.msra.mxu0 0
    %1652 = vmatprep.subr.bf16.mxu0 0
    %1653 = vmatpush1.bf16.msra.mxu0 0
    %1654 = vmatprep.mubr.bf16.mxu0 %v1564
    %1655 = vmatmul.mubr.bf16.gmra.mrb[0].mxu0 %v1357
    %v1656 = vpop.f32.mrb[0].mxu0
    %v1657 = vadd.f32 0.0, %v1656
    %v1658 = vpop.f32.mrb[0].mxu0
    %v1659 = vadd.f32 0.0, %v1658
    %v1660 = vpop.f32.mrb[0].mxu0
    %v1661 = vadd.f32 0.0, %v1660
    %v1662 = vpop.f32.mrb[0].mxu0
    %v1663 = vadd.f32 0.0, %v1662
    %1664 = vmatprep.mubr.bf16.mxu0 %v1567
    %1665 = vmatmul.mubr.bf16.gmra.mrb[0].mxu0 %v1359
    %v1666 = vpop.f32.mrb[0].mxu0
    %v1667 = vadd.f32 0.0, %v1666
    %v1668 = vpop.f32.mrb[0].mxu0
    %v1669 = vadd.f32 0.0, %v1668
    %v1670 = vpop.f32.mrb[0].mxu0
    %v1671 = vadd.f32 0.0, %v1670
    %v1672 = vpop.f32.mrb[0].mxu0
    %v1673 = vadd.f32 0.0, %v1672
    %1674 = vdwg.mxu0
    %v1675 = vadd.f32 %v1241, %v1604
    %v1676 = vadd.f32 %v1242, %v1606
    %v1677 = vadd.f32 %v1243, %v1657
    %v1678 = vadd.f32 %v1244, %v1659
    %v1679 = vadd.f32 %v1245, %v1608
    %v1680 = vadd.f32 %v1246, %v1610
    %v1681 = vadd.f32 %v1247, %v1661
    %v1682 = vadd.f32 %v1248, %v1663
    %v1683 = vadd.f32 %v1249, %v1614
    %v1684 = vadd.f32 %v1250, %v1616
    %v1685 = vadd.f32 %v1251, %v1667
    %v1686 = vadd.f32 %v1252, %v1669
    %v1687 = vadd.f32 %v1253, %v1618
    %v1688 = vadd.f32 %v1254, %v1620
    %v1689 = vadd.f32 %v1255, %v1671
    %v1690 = vadd.f32 %v1256, %v1673
    %v1691 = vmul.f32 %v1675, %v1675
    %v1692 = vmul.f32 %v1676, %v1676
    %v1693 = vmul.f32 %v1679, %v1679
    %v1694 = vmul.f32 %v1680, %v1680
    %v1695 = vmul.f32 %v1683, %v1683
    %v1696 = vmul.f32 %v1684, %v1684
    %v1697 = vmul.f32 %v1687, %v1687
    %v1698 = vmul.f32 %v1688, %v1688
    %v1699 = vmul.f32 %v1677, %v1677
    %v1700 = vmul.f32 %v1678, %v1678
    %v1701 = vmul.f32 %v1681, %v1681
    %v1702 = vmul.f32 %v1682, %v1682
    %v1703 = vmul.f32 %v1685, %v1685
    %v1704 = vmul.f32 %v1686, %v1686
    %v1705 = vmul.f32 %v1689, %v1689
    %v1706 = vmul.f32 %v1690, %v1690
    %v1707 = vadd.f32 %v1691, %v1699
    %v1708 = vadd.f32 %v1692, %v1700
    %v1709 = vadd.f32 %v1693, %v1701
    %v1710 = vadd.f32 %v1694, %v1702
    %v1711 = vadd.f32 %v1695, %v1703
    %v1712 = vadd.f32 %v1696, %v1704
    %v1713 = vadd.f32 %v1697, %v1705
    %v1714 = vadd.f32 %v1698, %v1706
    %v1715 = vld [vmem:[#allocation6] sm:$0xff]
    %v1716 = vld [vmem:[#allocation6 + $0x8] sm:$0xff]
    %v1717 = vld [vmem:[#allocation6 + $0x10] sm:$0xff]
    %v1718 = vld [vmem:[#allocation6 + $0x18] sm:$0xff]
    %v1719 = vld [vmem:[#allocation6 + $0x20] sm:$0xff]
    %v1720 = vld [vmem:[#allocation6 + $0x28] sm:$0xff]
    %v1721 = vld [vmem:[#allocation6 + $0x30] sm:$0xff]
    %v1722 = vld [vmem:[#allocation6 + $0x38] sm:$0xff]
    %v1723 = vld [vmem:[#allocation6 + $0x40] sm:$0xff]
    %v1724 = vld [vmem:[#allocation6 + $0x48] sm:$0xff]
    %v1725 = vld [vmem:[#allocation6 + $0x50] sm:$0xff]
    %v1726 = vld [vmem:[#allocation6 + $0x58] sm:$0xff]
    %v1727 = vld [vmem:[#allocation6 + $0x60] sm:$0xff]
    %v1728 = vld [vmem:[#allocation6 + $0x68] sm:$0xff]
    %v1729 = vld [vmem:[#allocation6 + $0x70] sm:$0xff]
    %v1730 = vld [vmem:[#allocation6 + $0x78] sm:$0xff]
    %v1731 = vld [vmem:[#allocation6 + $0x80] sm:$0xff]
    %v1732 = vld [vmem:[#allocation6 + $0x88] sm:$0xff]
    %v1733 = vld [vmem:[#allocation6 + $0x90] sm:$0xff]
    %v1734 = vld [vmem:[#allocation6 + $0x98] sm:$0xff]
    %v1735 = vld [vmem:[#allocation6 + $0xa0] sm:$0xff]
    %v1736 = vld [vmem:[#allocation6 + $0xa8] sm:$0xff]
    %v1737 = vld [vmem:[#allocation6 + $0xb0] sm:$0xff]
    %v1738 = vld [vmem:[#allocation6 + $0xb8] sm:$0xff]
    %v1739 = vld [vmem:[#allocation6 + $0xc0] sm:$0xff]
    %v1740 = vld [vmem:[#allocation6 + $0xc8] sm:$0xff]
    %v1741 = vld [vmem:[#allocation6 + $0xd0] sm:$0xff]
    %v1742 = vld [vmem:[#allocation6 + $0xd8] sm:$0xff]
    %v1743 = vld [vmem:[#allocation6 + $0xe0] sm:$0xff]
    %v1744 = vld [vmem:[#allocation6 + $0xe8] sm:$0xff]
    %v1745 = vld [vmem:[#allocation6 + $0xf0] sm:$0xff]
    %v1746 = vld [vmem:[#allocation6 + $0xf8] sm:$0xff]
    %1747 = vmatprep.subr.mxu0 0.0
    %1748 = vmatpush1.msra.mxu0 %v1715
    %1749 = vmatprep.subr.mxu0 0.0
    %1750 = vmatpush1.msra.mxu0 %v1716
    %1751 = vmatprep.subr.mxu0 0.0
    %1752 = vmatpush1.msra.mxu0 %v1717
    %1753 = vmatprep.subr.mxu0 0.0
    %1754 = vmatpush1.msra.mxu0 %v1718
    %1755 = vmatprep.subr.mxu0 0.0
    %1756 = vmatpush1.msra.mxu0 %v1719
    %1757 = vmatprep.subr.mxu0 0.0
    %1758 = vmatpush1.msra.mxu0 %v1720
    %1759 = vmatprep.subr.mxu0 0.0
    %1760 = vmatpush1.msra.mxu0 %v1721
    %1761 = vmatprep.subr.mxu0 0.0
    %1762 = vmatpush1.msra.mxu0 %v1722
    %1763 = vmatprep.subr.mxu0 0.0
    %1764 = vmatpush1.msra.mxu0 %v1723
    %1765 = vmatprep.subr.mxu0 0.0
    %1766 = vmatpush1.msra.mxu0 %v1724
    %1767 = vmatprep.subr.mxu0 0.0
    %1768 = vmatpush1.msra.mxu0 %v1725
    %1769 = vmatprep.subr.mxu0 0.0
    %1770 = vmatpush1.msra.mxu0 %v1726
    %1771 = vmatprep.subr.mxu0 0.0
    %1772 = vmatpush1.msra.mxu0 %v1727
    %1773 = vmatprep.subr.mxu0 0.0
    %1774 = vmatpush1.msra.mxu0 %v1728
    %1775 = vmatprep.subr.mxu0 0.0
    %1776 = vmatpush1.msra.mxu0 %v1729
    %1777 = vmatprep.subr.mxu0 0.0
    %1778 = vmatpush1.msra.mxu0 %v1730
    %1779 = vmatprep.subr.mxu0 0.0
    %1780 = vmatpush1.msra.mxu0 %v1731
    %1781 = vmatprep.subr.mxu0 0.0
    %1782 = vmatpush1.msra.mxu0 %v1732
    %1783 = vmatprep.subr.mxu0 0.0
    %1784 = vmatpush1.msra.mxu0 %v1733
    %1785 = vmatprep.subr.mxu0 0.0
    %1786 = vmatpush1.msra.mxu0 %v1734
    %1787 = vmatprep.subr.mxu0 0.0
    %1788 = vmatpush1.msra.mxu0 %v1735
    %1789 = vmatprep.subr.mxu0 0.0
    %1790 = vmatpush1.msra.mxu0 %v1736
    %1791 = vmatprep.subr.mxu0 0.0
    %1792 = vmatpush1.msra.mxu0 %v1737
    %1793 = vmatprep.subr.mxu0 0.0
    %1794 = vmatpush1.msra.mxu0 %v1738
    %1795 = vmatprep.subr.mxu0 0.0
    %1796 = vmatpush1.msra.mxu0 %v1739
    %1797 = vmatprep.subr.mxu0 0.0
    %1798 = vmatpush1.msra.mxu0 %v1740
    %1799 = vmatprep.subr.mxu0 0.0
    %1800 = vmatpush1.msra.mxu0 %v1741
    %1801 = vmatprep.subr.mxu0 0.0
    %1802 = vmatpush1.msra.mxu0 %v1742
    %1803 = vmatprep.subr.mxu0 0.0
    %1804 = vmatpush1.msra.mxu0 %v1743
    %1805 = vmatprep.subr.mxu0 0.0
    %1806 = vmatpush1.msra.mxu0 %v1744
    %1807 = vmatprep.subr.mxu0 0.0
    %1808 = vmatpush1.msra.mxu0 %v1745
    %1809 = vmatprep.subr.mxu0 0.0
    %1810 = vmatpush1.msra.mxu0 %v1746
    %1811 = vmatprep.mubr.f32.mxu0 %v1708
    %1812 = vmatmul.mubr.f32.gmra.mrb[0].mxu0 %v1707
    %v1813 = vpop.f32.mrb[0].mxu0
    %v1814 = vadd.f32 1e-06, %v1813
    %v1815 = vpop.f32.mrb[0].mxu0
    %1816 = vmatprep.mubr.f32.mxu0 %v1710
    %1817 = vmatmul.mubr.f32.gmra.mrb[0].mxu0 %v1709
    %v1818 = vpop.f32.mrb[0].mxu0
    %v1819 = vadd.f32 1e-06, %v1818
    %v1820 = vpop.f32.mrb[0].mxu0
    %1821 = vmatprep.mubr.f32.mxu0 %v1712
    %1822 = vmatmul.mubr.f32.gmra.mrb[0].mxu0 %v1711
    %v1823 = vpop.f32.mrb[0].mxu0
    %v1824 = vadd.f32 1e-06, %v1823
    %v1825 = vpop.f32.mrb[0].mxu0
    %1826 = vmatprep.mubr.f32.mxu0 %v1714
    %1827 = vmatmul.mubr.f32.gmra.mrb[0].mxu0 %v1713
    %v1828 = vpop.f32.mrb[0].mxu0
    %v1829 = vadd.f32 1e-06, %v1828
    %v1830 = vpop.f32.mrb[0].mxu0
    %1831 = vdwg.mxu0
    %v1832 = vlog2.pop %v1814
    %v1833 = vmul.f32 %v1832, 0.6931472
    %v1834 = vlog2.pop %v1819
    %v1835 = vmul.f32 %v1834, 0.6931472
    %v1836 = vlog2.pop %v1824
    %v1837 = vmul.f32 %v1836, 0.6931472
    %v1838 = vlog2.pop %v1829
    %v1839 = vmul.f32 %v1838, 0.6931472
    %v1840 = vadd.f32 %v1833, %v1835
    %v1841 = vrot.slane %v1840, 4
    %v1842 = vadd.f32 %v1840, %v1841
    %v1843 = vrot.slane %v1842, 2
    %v1844 = vadd.f32 %v1842, %v1843
    %v1845 = vrot.slane %v1844, 1
    %v1846 = vadd.f32 %v1844, %v1845
    %v1847 = vadd.f32 %v1837, %v1839
    %v1848 = vrot.slane %v1847, 4
    %v1849 = vadd.f32 %v1847, %v1848
    %v1850 = vrot.slane %v1849, 2
    %v1851 = vadd.f32 %v1849, %v1850
    %v1852 = vrot.slane %v1851, 1
    %v1853 = vadd.f32 %v1851, %v1852
    %v1854 = vmul.f32 %v1846, 0.0625
    %v1855 = vmul.f32 %v1853, 0.0625
    %v1856 = vsub.f32 %v1833, %v1854
    %v1857 = vsub.f32 %v1835, %v1854
    %v1858 = vsub.f32 %v1837, %v1855
    %v1859 = vsub.f32 %v1839, %v1855
    %v1860 = vmul.f32 %v1856, %v1856
    %v1861 = vmul.f32 %v1857, %v1857
    %v1862 = vmul.f32 %v1858, %v1858
    %v1863 = vmul.f32 %v1859, %v1859
    %v1864 = vadd.f32 %v1860, %v1861
    %v1865 = vrot.slane %v1864, 4
    %v1866 = vadd.f32 %v1864, %v1865
    %v1867 = vrot.slane %v1866, 2
    %v1868 = vadd.f32 %v1866, %v1867
    %v1869 = vrot.slane %v1868, 1
    %v1870 = vadd.f32 %v1868, %v1869
    %v1871 = vadd.f32 %v1862, %v1863
    %v1872 = vrot.slane %v1871, 4
    %v1873 = vadd.f32 %v1871, %v1872
    %v1874 = vrot.slane %v1873, 2
    %v1875 = vadd.f32 %v1873, %v1874
    %v1876 = vrot.slane %v1875, 1
    %v1877 = vadd.f32 %v1875, %v1876
    %v1878 = vmul.f32 %v1870, 0.0625
    %v1879 = vmul.f32 %v1877, 0.0625
    %v1880 = vadd.f32 %v1878, 1e-05
    %v1881 = vadd.f32 %v1879, 1e-05
    %v1882 = vrsqrt.pop %v1880
    %v1883 = vrsqrt.pop %v1881
    %v1884 = vmul.f32 %v1856, %v1882
    %v1885 = vmul.f32 %v1857, %v1882
    %v1886 = vmul.f32 %v1858, %v1883
    %v1887 = vmul.f32 %v1859, %v1883
    %1888 = vxpose.xlu0.b32.start [1/16] %v1884, 128
    %1889 = vxpose.xlu0.b32.cont [2/16] %v1885, 128
    %1890 = vxpose.xlu0.b32.cont [3/16] 0.0, 128
    %1891 = vxpose.xlu0.b32.cont [4/16] 0.0, 128
    %1892 = vxpose.xlu0.b32.cont [5/16] 0.0, 128
    %1893 = vxpose.xlu0.b32.cont [6/16] 0.0, 128
    %1894 = vxpose.xlu0.b32.cont [7/16] 0.0, 128
    %1895 = vxpose.xlu0.b32.cont [8/16] 0.0, 128
    %1896 = vxpose.xlu0.b32.cont [9/16] 0.0, 128
    %1897 = vxpose.xlu0.b32.cont [10/16] 0.0, 128
    %1898 = vxpose.xlu0.b32.cont [11/16] 0.0, 128
    %1899 = vxpose.xlu0.b32.cont [12/16] 0.0, 128
    %1900 = vxpose.xlu0.b32.cont [13/16] 0.0, 128
    %1901 = vxpose.xlu0.b32.cont [14/16] 0.0, 128
    %1902 = vxpose.xlu0.b32.cont [15/16] 0.0, 128
    %1903 = vxpose.xlu0.b32.end [16/16] 0.0, 128
    %v1904 = vpop.trf.xlu0
    %v1905 = vpop.trf.xlu0
    %v1906 = vpop.trf.xlu0
    %v1907 = vpop.trf.xlu0
    %v1908 = vpop.trf.xlu0
    %v1909 = vpop.trf.xlu0
    %v1910 = vpop.trf.xlu0
    %v1911 = vpop.trf.xlu0
    %v1912 = vpop.trf.xlu0
    %v1913 = vpop.trf.xlu0
    %v1914 = vpop.trf.xlu0
    %v1915 = vpop.trf.xlu0
    %v1916 = vpop.trf.xlu0
    %v1917 = vpop.trf.xlu0
    %v1918 = vpop.trf.xlu0
    %v1919 = vpop.trf.xlu0
    %vm1920 = vcmask 130048
    %1921 = vst.msk [vmem:[%s3] sm:$0xff] %vm1920, %v1904
    %1922 = vst.msk [vmem:[%s3 + $0x8] sm:$0xff] %vm1920, %v1905
    %1923 = vst.msk [vmem:[%s3 + $0x10] sm:$0xff] %vm1920, %v1906
    %1924 = vst.msk [vmem:[%s3 + $0x18] sm:$0xff] %vm1920, %v1907
    %1925 = vst.msk [vmem:[%s3 + $0x20] sm:$0xff] %vm1920, %v1908
    %1926 = vst.msk [vmem:[%s3 + $0x28] sm:$0xff] %vm1920, %v1909
    %1927 = vst.msk [vmem:[%s3 + $0x30] sm:$0xff] %vm1920, %v1910
    %1928 = vst.msk [vmem:[%s3 + $0x38] sm:$0xff] %vm1920, %v1911
    %1929 = vst.msk [vmem:[%s3 + $0x40] sm:$0xff] %vm1920, %v1912
    %1930 = vst.msk [vmem:[%s3 + $0x48] sm:$0xff] %vm1920, %v1913
    %1931 = vst.msk [vmem:[%s3 + $0x50] sm:$0xff] %vm1920, %v1914
    %1932 = vst.msk [vmem:[%s3 + $0x58] sm:$0xff] %vm1920, %v1915
    %1933 = vst.msk [vmem:[%s3 + $0x60] sm:$0xff] %vm1920, %v1916
    %1934 = vst.msk [vmem:[%s3 + $0x68] sm:$0xff] %vm1920, %v1917
    %1935 = vst.msk [vmem:[%s3 + $0x70] sm:$0xff] %vm1920, %v1918
    %1936 = vst.msk [vmem:[%s3 + $0x78] sm:$0xff] %vm1920, %v1919
    %1937 = vxpose.xlu0.b32.start [1/16] %v1886, 128
    %1938 = vxpose.xlu0.b32.cont [2/16] %v1887, 128
    %1939 = vxpose.xlu0.b32.cont [3/16] 0.0, 128
    %1940 = vxpose.xlu0.b32.cont [4/16] 0.0, 128
    %1941 = vxpose.xlu0.b32.cont [5/16] 0.0, 128
    %1942 = vxpose.xlu0.b32.cont [6/16] 0.0, 128
    %1943 = vxpose.xlu0.b32.cont [7/16] 0.0, 128
    %1944 = vxpose.xlu0.b32.cont [8/16] 0.0, 128
    %1945 = vxpose.xlu0.b32.cont [9/16] 0.0, 128
    %1946 = vxpose.xlu0.b32.cont [10/16] 0.0, 128
    %1947 = vxpose.xlu0.b32.cont [11/16] 0.0, 128
    %1948 = vxpose.xlu0.b32.cont [12/16] 0.0, 128
    %1949 = vxpose.xlu0.b32.cont [13/16] 0.0, 128
    %1950 = vxpose.xlu0.b32.cont [14/16] 0.0, 128
    %1951 = vxpose.xlu0.b32.cont [15/16] 0.0, 128
    %1952 = vxpose.xlu0.b32.end [16/16] 0.0, 128
    %v1953 = vpop.trf.xlu0
    %v1954 = vpop.trf.xlu0
    %v1955 = vpop.trf.xlu0
    %v1956 = vpop.trf.xlu0
    %v1957 = vpop.trf.xlu0
    %v1958 = vpop.trf.xlu0
    %v1959 = vpop.trf.xlu0
    %v1960 = vpop.trf.xlu0
    %v1961 = vpop.trf.xlu0
    %v1962 = vpop.trf.xlu0
    %v1963 = vpop.trf.xlu0
    %v1964 = vpop.trf.xlu0
    %v1965 = vpop.trf.xlu0
    %v1966 = vpop.trf.xlu0
    %v1967 = vpop.trf.xlu0
    %v1968 = vpop.trf.xlu0
    %s1969 = scalar_lea.vmem %s3, 128
    %1970 = vst.msk [vmem:[%s1969] sm:$0xff] %vm1920, %v1953
    %1971 = vst.msk [vmem:[%s1969 + $0x8] sm:$0xff] %vm1920, %v1954
    %1972 = vst.msk [vmem:[%s1969 + $0x10] sm:$0xff] %vm1920, %v1955
    %1973 = vst.msk [vmem:[%s1969 + $0x18] sm:$0xff] %vm1920, %v1956
    %1974 = vst.msk [vmem:[%s1969 + $0x20] sm:$0xff] %vm1920, %v1957
    %1975 = vst.msk [vmem:[%s1969 + $0x28] sm:$0xff] %vm1920, %v1958
    %1976 = vst.msk [vmem:[%s1969 + $0x30] sm:$0xff] %vm1920, %v1959
    %1977 = vst.msk [vmem:[%s1969 + $0x38] sm:$0xff] %vm1920, %v1960
    %1978 = vst.msk [vmem:[%s1969 + $0x40] sm:$0xff] %vm1920, %v1961
    %1979 = vst.msk [vmem:[%s1969 + $0x48] sm:$0xff] %vm1920, %v1962
    %1980 = vst.msk [vmem:[%s1969 + $0x50] sm:$0xff] %vm1920, %v1963
    %1981 = vst.msk [vmem:[%s1969 + $0x58] sm:$0xff] %vm1920, %v1964
    %1982 = vst.msk [vmem:[%s1969 + $0x60] sm:$0xff] %vm1920, %v1965
    %1983 = vst.msk [vmem:[%s1969 + $0x68] sm:$0xff] %vm1920, %v1966
    %1984 = vst.msk [vmem:[%s1969 + $0x70] sm:$0xff] %vm1920, %v1967
    %1985 = vst.msk [vmem:[%s1969 + $0x78] sm:$0xff] %vm1920, %v1968
    // Predicated region
    $region26: #{tpu_custom_call.1} parent=1 // pred_check
      _
    $region27: #{tpu_custom_call.1} parent=1 // pred_check_branch
      %1987 = sbr.rel (0) target = $region29
    $region28: #{tpu_custom_call.1} parent=1 // pred_region
      _
    $region29: #{tpu_custom_call.1} parent=1 // pred_fallthru
      _
    // Predicated region
    $region30: #{tpu_custom_call.1} parent=1 // pred_check
      _
    $region31: #{tpu_custom_call.1} parent=1 // pred_check_branch
      %1989 = sbr.rel (0) target = $region33
    $region32: #{tpu_custom_call.1} parent=1 // pred_region
      _
    $region33: #{tpu_custom_call.1} parent=1 // pred_fallthru
      _
    %1990 = vsyncpa [#allocation3], 1
    %1991 = vsyncpa [#allocation5], 1

</llo_original>
